<compile_context>
chip_gen: v7x
topology: tpu7x:2x2x1
jax: 0.10.0
libtpu: 0.0.40
codegen_flags: <defaults>
</compile_context>

<pallas_src>
import functools

import jax
import jax.numpy as jnp
from jax.experimental import pallas as pl
from jax.experimental.pallas import tpu as pltpu


# ----------------------------------------------------------------------------
# Kernel 1: fused conv3x3 (im2col matmul) + bias + ReLU + global-avg-pool.
# ----------------------------------------------------------------------------
def _conv_pool_kernel(p_ref, w_ref, b_ref, pm_ref, o_ref):
    # p_ref : (TN, THW, K)   bf16 im2col patches (K = 9*Cin, NOT lane-padded)
    # w_ref : (K, Cp)        bf16 flattened conv weight (C zero-padded to Cp)
    # b_ref : (1, Cp)        f32 conv bias (zero-padded)
    # pm_ref: (TN, TN*THW)   f32 block-diagonal pooling weights (each 1/(H*W))
    # o_ref : (TN, Cp)       f32 pooled features, resident accumulator across
    #                        the HW grid axis.
    @pl.when(pl.program_id(1) == 0)
    def _():
        o_ref[...] = jnp.zeros_like(o_ref)

    tn, thw, k = p_ref.shape
    p = p_ref[...].reshape(tn * thw, k)          # tile-aligned leading-dim collapse
    h = jnp.dot(p, w_ref[...], preferred_element_type=jnp.float32)
    h = jnp.maximum(h + b_ref[...], 0.0)         # (TN*THW, Cp)
    # Global-average-pool as an MXU matmul; accumulating the partial
    # (1/(H*W))-weighted sums over HW tiles yields the exact per-image mean.
    o_ref[...] += jnp.dot(pm_ref[...], h, preferred_element_type=jnp.float32)


def conv_pool(patches, w_flat, b_row, pool_mat, tn, thw):
    n, hw, k = patches.shape
    cp = w_flat.shape[-1]
    return pl.pallas_call(
        _conv_pool_kernel,
        out_shape=jax.ShapeDtypeStruct((n, cp), jnp.float32),
        grid=(n // tn, hw // thw),
        in_specs=[
            pl.BlockSpec((tn, thw, k), lambda i, j: (i, j, 0)),
            # Constant-index weight blocks; at realistic backbone widths these
            # could additionally request pipeline_mode=pl.Buffered(1).
            pl.BlockSpec((k, cp), lambda i, j: (0, 0)),
            pl.BlockSpec((1, cp), lambda i, j: (0, 0)),
            pl.BlockSpec((tn, tn * thw), lambda i, j: (0, 0)),
        ],
        out_specs=pl.BlockSpec((tn, cp), lambda i, j: (i, 0)),
        compiler_params=pltpu.CompilerParams(
            dimension_semantics=("parallel", "arbitrary")),
    )(patches, w_flat, b_row, pool_mat)


# ----------------------------------------------------------------------------
# Kernel 2: MLP head on the flattened (2B, Cp) rows in ONE pallas_call:
# Linear -> per-view BatchNorm (training batch stats) -> ReLU -> Linear -> L2.
# ----------------------------------------------------------------------------
def _head_kernel(x_ref, w1_ref, b1_ref, g_ref, be_ref, w2_ref, b2_ref, o_ref,
                 *, batch):
    x = x_ref[...].astype(jnp.bfloat16)                       # (2B, Cp)
    h = jnp.dot(x, w1_ref[...],
                preferred_element_type=jnp.float32) + b1_ref[...]
    # Per-view BatchNorm: rows [0,B) = q view, rows [B,2B) = k view.
    # Training-mode batch statistics, biased variance, eps=1e-5 — identical to
    # running the two encoder calls of the PyTorch module separately.
    parts = []
    for v in range(2):
        hv = h[v * batch:(v + 1) * batch]
        mu = jnp.mean(hv, axis=0, keepdims=True)
        ctr = hv - mu
        var = jnp.mean(ctr * ctr, axis=0, keepdims=True)
        parts.append(ctr * jax.lax.rsqrt(var + 1e-5))
    h = jnp.concatenate(parts, axis=0)
    h = jnp.maximum(h * g_ref[...] + be_ref[...], 0.0)        # affine + ReLU
    z = jnp.dot(h.astype(jnp.bfloat16), w2_ref[...],
                preferred_element_type=jnp.float32) + b2_ref[...]
    # F.normalize(z, dim=1) == z * rsqrt(max(||z||^2, 1e-24))
    inv = jax.lax.rsqrt(
        jnp.maximum(jnp.sum(z * z, axis=-1, keepdims=True), 1e-24))
    o_ref[...] = z * inv


def head_forward(pooled, hp, batch):
    n = pooled.shape[0]
    dim = hp["w2"].shape[-1]
    # Single invocation; all (tiny) arrays live fully in VMEM; the (2B, 128)
    # output is lane-dense.
    return pl.pallas_call(
        functools.partial(_head_kernel, batch=batch),
        out_shape=jax.ShapeDtypeStruct((n, dim), jnp.float32),
    )(pooled, hp["w1"], hp["b1"], hp["gamma"], hp["beta"], hp["w2"], hp["b2"])


# ----------------------------------------------------------------------------
# Wrapper-side layout plumbing + SupCont forward (training path).
# ----------------------------------------------------------------------------
def _im2col_3x3(x_nhwc):
    # 3x3 same-padded patches; channel order (ky, kx, cin) matches
    # conv_w.reshape(9*Cin, C). No lane padding — K stays 9*Cin in HBM.
    n, h, w, cin = x_nhwc.shape
    xp = jnp.pad(x_nhwc, ((0, 0), (1, 1), (1, 1), (0, 0)))
    taps = [xp[:, ky:ky + h, kx:kx + w, :]
            for ky in range(3) for kx in range(3)]
    return jnp.concatenate(taps, axis=-1).reshape(n, h * w, 9 * cin)


def _largest_divisor_leq(n, cap):
    d = max(1, min(n, cap))
    while n % d:
        d -= 1
    return d


@jax.jit
def supcont_forward(im_q, im_k, label, params):
    b, cin = im_q.shape[0], im_q.shape[1]
    c = params["conv_w"].shape[-1]
    dim = params["w2"].shape[-1]
    k = 9 * cin
    cp = pl.cdiv(c, 128) * 128                     # lane-dense backbone width

    # Batch both views through one encoder pass (conv/pool have no batch
    # statistics; BN stays per-view inside the head kernel).
    x = jnp.concatenate([im_q, im_k], axis=0)                  # (2B, Cin, H, W)
    x = jnp.transpose(x, (0, 2, 3, 1)).astype(jnp.float32)     # NHWC
    patches = _im2col_3x3(x).astype(jnp.bfloat16)              # (2B, HW, K)
    n, hw, _ = patches.shape

    # Tiling: TN images and THW pixels per grid step -> >=512 matmul rows per
    # step; the HW axis is a reduction with a resident (TN, Cp) accumulator.
    tn = _largest_divisor_leq(n, 8)
    thw = _largest_divisor_leq(hw, max(8, 512 // tn))

    # Zero-pad the channel axis C -> Cp once on the (tiny) parameters so every
    # kernel store is lane-dense. Padded columns stay exactly zero through
    # conv+bias+ReLU+pool and BN(gamma=beta=0)+ReLU, and the padded rows of w2
    # are zero, so the projection output is exact.
    w_flat = jnp.pad(params["conv_w"].reshape(k, c),
                     ((0, 0), (0, cp - c))).astype(jnp.bfloat16)
    b_row = jnp.pad(params["conv_b"], (0, cp - c)).reshape(1, cp)
    pool_mat = jnp.kron(jnp.eye(tn, dtype=jnp.float32),
                        jnp.full((1, thw), 1.0 / hw, jnp.float32))

    pooled = conv_pool(patches, w_flat, b_row, pool_mat, tn, thw)   # (2B, Cp)

    head_params = {
        "w1": jnp.pad(params["w1"],
                      ((0, cp - c), (0, cp - c))).astype(jnp.bfloat16),
        "b1": jnp.pad(params["b1"], (0, cp - c)).reshape(1, cp),
        "gamma": jnp.pad(params["gamma"], (0, cp - c)).reshape(1, cp),
        "beta": jnp.pad(params["beta"], (0, cp - c)).reshape(1, cp),
        "w2": jnp.pad(params["w2"], ((0, cp - c), (0, 0))).astype(jnp.bfloat16),
        "b2": params["b2"].reshape(1, dim),
    }
    out = head_forward(pooled, head_params, b)                      # (2B, dim)

    # concat_all_gather is an identity at world_size == 1 (single device).
    all_q, all_k = out[:b], out[b:]
    all_qk = jnp.concatenate([all_q[:, None, :], all_k[:, None, :]], axis=1)
    return all_qk, label


def init_params(key, cin, c, dim):
    ks = jax.random.split(key, 6)
    s_conv = 1.0 / jnp.sqrt(9.0 * cin)
    s1 = 1.0 / jnp.sqrt(float(c))
    return {
        "conv_w": jax.random.normal(ks[0], (3, 3, cin, c), jnp.float32) * s_conv,
        "conv_b": jax.random.normal(ks[1], (c,), jnp.float32) * 0.01,
        "w1": jax.random.normal(ks[2], (c, c), jnp.float32) * s1,
        "b1": jax.random.normal(ks[3], (c,), jnp.float32) * 0.01,
        "gamma": jnp.ones((c,), jnp.float32),
        "beta": jnp.zeros((c,), jnp.float32),
        "w2": jax.random.normal(ks[4], (c, dim), jnp.float32) * s1,
        "b2": jax.random.normal(ks[5], (dim,), jnp.float32) * 0.01,
    }


if __name__ == "__main__":
    B, Cin, H, W = 2, 4, 16, 16      # small NCHW images
    C_mlp, DIM = 32, 128             # dim_mlp (backbone width), projection dim

    root = jax.random.PRNGKey(0)
    k_q, k_k, k_lbl, k_par = jax.random.split(root, 4)
    im_q = jax.random.normal(k_q, (B, Cin, H, W), jnp.float32)
    im_k = jax.random.normal(k_k, (B, Cin, H, W), jnp.float32)
    label = jax.random.randint(k_lbl, (B,), 0, 10, jnp.int32)
    params = init_params(k_par, Cin, C_mlp, DIM)

    all_qk, all_label = supcont_forward(im_q, im_k, label, params)
    jax.block_until_ready((all_qk, all_label))

    assert all_qk.shape == (B, 2, DIM)
    assert all_label.shape == (B,)
    # sanity: rows are L2-normalized
    norms = jnp.linalg.norm(all_qk, axis=-1)
    assert bool(jnp.all(jnp.abs(norms - 1.0) < 1e-4))
    print("KERNEL_OK")
</pallas_src>

<mosaic_0001>
module attributes {stable_mosaic.version = 11 : i64} {
  func.func @_conv_pool_kernel(%arg0: i32, %arg1: i32, %arg2: memref<4x128x36xbf16, #tpu.memory_space<vmem>>, %arg3: memref<36x128xbf16, #tpu.memory_space<vmem>>, %arg4: memref<1x128xf32, #tpu.memory_space<vmem>>, %arg5: memref<4x512xf32, #tpu.memory_space<vmem>>, %arg6: memref<4x128xf32, #tpu.memory_space<vmem>>) attributes {dimension_semantics = [#tpu.dimension_semantics<parallel>, #tpu.dimension_semantics<arbitrary>], iteration_bounds = array<i64: 1, 2>, scalar_prefetch = 0 : i64, scratch_operands = 0 : i64, tpu.core_type = #tpu.core_type<tc>, window_params = [{transform_indices = @transform_0, window_bounds = array<i64: 4, 128, 36>}, {pipeline_mode = #tpu.pipeline_mode<synchronous>, transform_indices = @transform_1, window_bounds = array<i64: 36, 128>}, {pipeline_mode = #tpu.pipeline_mode<synchronous>, transform_indices = @transform_2, window_bounds = array<i64: 1, 128>}, {pipeline_mode = #tpu.pipeline_mode<synchronous>, transform_indices = @transform_3, window_bounds = array<i64: 4, 512>}, {transform_indices = @transform_4, window_bounds = array<i64: 4, 128>}]} {
    %c0_i32 = arith.constant 0 : i32
    %0 = arith.cmpi eq, %arg1, %c0_i32 : i32
    %1 = arith.extui %0 : i1 to i32
    %c0_i32_0 = arith.constant 0 : i32
    %2 = arith.cmpi ne, %1, %c0_i32_0 : i32
    scf.if %2 {
      %cst_15 = arith.constant 0.000000e+00 : f32
      %17 = vector.broadcast %cst_15 : f32 to vector<4x128xf32>
      %c0_16 = arith.constant 0 : index
      %c0_17 = arith.constant 0 : index
      %18 = vector.load %arg6[%c0_16, %c0_17] : memref<4x128xf32, #tpu.memory_space<vmem>>, vector<4x128xf32>
      tpu.vector_store %arg6[%c0_16, %c0_17], %17 {strides = array<i32>} : memref<4x128xf32, #tpu.memory_space<vmem>>, vector<4x128xf32>,
    } else {
    }
    %c0 = arith.constant 0 : index
    %c0_1 = arith.constant 0 : index
    %c0_2 = arith.constant 0 : index
    %3 = vector.load %arg2[%c0, %c0_1, %c0_2] : memref<4x128x36xbf16, #tpu.memory_space<vmem>>, vector<4x128x36xbf16>
    %4 = vector.shape_cast %3 : vector<4x128x36xbf16> to vector<512x36xbf16>
    %c0_3 = arith.constant 0 : index
    %c0_4 = arith.constant 0 : index
    %5 = vector.load %arg3[%c0_3, %c0_4] : memref<36x128xbf16, #tpu.memory_space<vmem>>, vector<36x128xbf16>
    %cst = arith.constant dense<0.000000e+00> : vector<512x128xf32>
    %6 = tpu.matmul %4, %5, %cst {dimension_numbers = #tpu.dot_dimension_numbers<[1], [0], [0], [1], [0, 0, 1, 1], [], []>} : vector<512x36xbf16>, vector<36x128xbf16>, vector<512x128xf32> -> vector<512x128xf32>
    %c0_5 = arith.constant 0 : index
    %c0_6 = arith.constant 0 : index
    %7 = vector.load %arg4[%c0_5, %c0_6] : memref<1x128xf32, #tpu.memory_space<vmem>>, vector<1x128xf32>
    %8 = vector.broadcast %7 : vector<1x128xf32> to vector<512x128xf32>
    %9 = arith.addf %6, %8 : vector<512x128xf32>
    %cst_7 = arith.constant 0.000000e+00 : f32
    %10 = vector.broadcast %cst_7 : f32 to vector<512x128xf32>
    %11 = arith.maximumf %9, %10 : vector<512x128xf32>
    %c0_8 = arith.constant 0 : index
    %c0_9 = arith.constant 0 : index
    %12 = vector.load %arg6[%c0_8, %c0_9] : memref<4x128xf32, #tpu.memory_space<vmem>>, vector<4x128xf32>
    %c0_10 = arith.constant 0 : index
    %c0_11 = arith.constant 0 : index
    %13 = vector.load %arg5[%c0_10, %c0_11] : memref<4x512xf32, #tpu.memory_space<vmem>>, vector<4x512xf32>
    %cst_12 = arith.constant dense<0.000000e+00> : vector<4x128xf32>
    %14 = tpu.matmul %13, %11, %cst_12 {dimension_numbers = #tpu.dot_dimension_numbers<[1], [0], [0], [1], [0, 0, 1, 1], [], []>} : vector<4x512xf32>, vector<512x128xf32>, vector<4x128xf32> -> vector<4x128xf32>
    %15 = arith.addf %12, %14 : vector<4x128xf32>
    %c0_13 = arith.constant 0 : index
    %c0_14 = arith.constant 0 : index
    %16 = vector.load %arg6[%c0_13, %c0_14] : memref<4x128xf32, #tpu.memory_space<vmem>>, vector<4x128xf32>
    tpu.vector_store %arg6[%c0_13, %c0_14], %15 {strides = array<i32>} : memref<4x128xf32, #tpu.memory_space<vmem>>, vector<4x128xf32>,
    return
  }
  func.func @transform_0(%arg0: i32, %arg1: i32) -> (i32, i32, i32) {
    %c0_i32 = arith.constant 0 : i32
    %c0_i32_0 = arith.constant 0 : i32
    return %arg0, %arg1, %c0_i32 : i32, i32, i32
  }
  func.func @transform_1(%arg0: i32, %arg1: i32) -> (i32, i32) {
    %c0_i32 = arith.constant 0 : i32
    %c0_i32_0 = arith.constant 0 : i32
    %c0_i32_1 = arith.constant 0 : i32
    return %c0_i32, %c0_i32_0 : i32, i32
  }
  func.func @transform_2(%arg0: i32, %arg1: i32) -> (i32, i32) {
    %c0_i32 = arith.constant 0 : i32
    %c0_i32_0 = arith.constant 0 : i32
    %c0_i32_1 = arith.constant 0 : i32
    return %c0_i32, %c0_i32_0 : i32, i32
  }
  func.func @transform_3(%arg0: i32, %arg1: i32) -> (i32, i32) {
    %c0_i32 = arith.constant 0 : i32
    %c0_i32_0 = arith.constant 0 : i32
    %c0_i32_1 = arith.constant 0 : i32
    return %c0_i32, %c0_i32_0 : i32, i32
  }
  func.func @transform_4(%arg0: i32, %arg1: i32) -> (i32, i32) {
    %c0_i32 = arith.constant 0 : i32
    %c0_i32_0 = arith.constant 0 : i32
    return %arg0, %c0_i32 : i32, i32
  }
}

module attributes {stable_mosaic.version = 11 : i64} {
  func.func @_head_kernel(%arg0: memref<4x128xf32, #tpu.memory_space<vmem>>, %arg1: memref<128x128xbf16, #tpu.memory_space<vmem>>, %arg2: memref<1x128xf32, #tpu.memory_space<vmem>>, %arg3: memref<1x128xf32, #tpu.memory_space<vmem>>, %arg4: memref<1x128xf32, #tpu.memory_space<vmem>>, %arg5: memref<128x128xbf16, #tpu.memory_space<vmem>>, %arg6: memref<1x128xf32, #tpu.memory_space<vmem>>, %arg7: memref<4x128xf32, #tpu.memory_space<vmem>>) attributes {dimension_semantics = [], scalar_prefetch = 0 : i64, scratch_operands = 0 : i64, tpu.core_type = #tpu.core_type<tc>} {
    %c0 = arith.constant 0 : index
    %c0_0 = arith.constant 0 : index
    %0 = vector.load %arg0[%c0, %c0_0] : memref<4x128xf32, #tpu.memory_space<vmem>>, vector<4x128xf32>
    %1 = arith.truncf %0 : vector<4x128xf32> to vector<4x128xbf16>
    %c0_1 = arith.constant 0 : index
    %c0_2 = arith.constant 0 : index
    %2 = vector.load %arg1[%c0_1, %c0_2] : memref<128x128xbf16, #tpu.memory_space<vmem>>, vector<128x128xbf16>
    %cst = arith.constant dense<0.000000e+00> : vector<4x128xf32>
    %3 = tpu.matmul %1, %2, %cst {dimension_numbers = #tpu.dot_dimension_numbers<[1], [0], [0], [1], [0, 0, 1, 1], [], []>} : vector<4x128xbf16>, vector<128x128xbf16>, vector<4x128xf32> -> vector<4x128xf32>
    %c0_3 = arith.constant 0 : index
    %c0_4 = arith.constant 0 : index
    %4 = vector.load %arg2[%c0_3, %c0_4] : memref<1x128xf32, #tpu.memory_space<vmem>>, vector<1x128xf32>
    %5 = vector.broadcast %4 : vector<1x128xf32> to vector<4x128xf32>
    %6 = arith.addf %3, %5 : vector<4x128xf32>
    %7 = vector.extract_strided_slice %6 {offsets = [0, 0], sizes = [2, 128], strides = [1, 1]} : vector<4x128xf32> to vector<2x128xf32>
    %cst_5 = arith.constant dense<0.000000e+00> : vector<128xf32>
    %8 = vector.multi_reduction <add>, %7, %cst_5 [0] : vector<2x128xf32> to vector<128xf32>
    %9 = vector.shape_cast %8 : vector<128xf32> to vector<1x128xf32>
    %cst_6 = arith.constant 2.000000e+00 : f32
    %10 = vector.broadcast %cst_6 : f32 to vector<1x128xf32>
    %11 = arith.divf %9, %10 : vector<1x128xf32>
    %12 = vector.broadcast %11 : vector<1x128xf32> to vector<2x128xf32>
    %13 = arith.subf %7, %12 : vector<2x128xf32>
    %14 = arith.mulf %13, %13 : vector<2x128xf32>
    %cst_7 = arith.constant dense<0.000000e+00> : vector<128xf32>
    %15 = vector.multi_reduction <add>, %14, %cst_7 [0] : vector<2x128xf32> to vector<128xf32>
    %16 = vector.shape_cast %15 : vector<128xf32> to vector<1x128xf32>
    %cst_8 = arith.constant 2.000000e+00 : f32
    %17 = vector.broadcast %cst_8 : f32 to vector<1x128xf32>
    %18 = arith.divf %16, %17 : vector<1x128xf32>
    %cst_9 = arith.constant 9.99999974E-6 : f32
    %19 = vector.broadcast %cst_9 : f32 to vector<1x128xf32>
    %20 = arith.addf %18, %19 : vector<1x128xf32>
    %21 = math.rsqrt %20 : vector<1x128xf32>
    %22 = vector.broadcast %21 : vector<1x128xf32> to vector<2x128xf32>
    %23 = arith.mulf %13, %22 : vector<2x128xf32>
    %24 = vector.extract_strided_slice %6 {offsets = [2, 0], sizes = [2, 128], strides = [1, 1]} : vector<4x128xf32> to vector<2x128xf32>
    %cst_10 = arith.constant dense<0.000000e+00> : vector<128xf32>
    %25 = vector.multi_reduction <add>, %24, %cst_10 [0] : vector<2x128xf32> to vector<128xf32>
    %26 = vector.shape_cast %25 : vector<128xf32> to vector<1x128xf32>
    %cst_11 = arith.constant 2.000000e+00 : f32
    %27 = vector.broadcast %cst_11 : f32 to vector<1x128xf32>
    %28 = arith.divf %26, %27 : vector<1x128xf32>
    %29 = vector.broadcast %28 : vector<1x128xf32> to vector<2x128xf32>
    %30 = arith.subf %24, %29 : vector<2x128xf32>
    %31 = arith.mulf %30, %30 : vector<2x128xf32>
    %cst_12 = arith.constant dense<0.000000e+00> : vector<128xf32>
    %32 = vector.multi_reduction <add>, %31, %cst_12 [0] : vector<2x128xf32> to vector<128xf32>
    %33 = vector.shape_cast %32 : vector<128xf32> to vector<1x128xf32>
    %cst_13 = arith.constant 2.000000e+00 : f32
    %34 = vector.broadcast %cst_13 : f32 to vector<1x128xf32>
    %35 = arith.divf %33, %34 : vector<1x128xf32>
    %cst_14 = arith.constant 9.99999974E-6 : f32
    %36 = vector.broadcast %cst_14 : f32 to vector<1x128xf32>
    %37 = arith.addf %35, %36 : vector<1x128xf32>
    %38 = math.rsqrt %37 : vector<1x128xf32>
    %39 = vector.broadcast %38 : vector<1x128xf32> to vector<2x128xf32>
    %40 = arith.mulf %30, %39 : vector<2x128xf32>
    %41 = tpu.concatenate %23, %40 in 0 : vector<2x128xf32>, vector<2x128xf32> -> vector<4x128xf32>
    %c0_15 = arith.constant 0 : index
    %c0_16 = arith.constant 0 : index
    %42 = vector.load %arg3[%c0_15, %c0_16] : memref<1x128xf32, #tpu.memory_space<vmem>>, vector<1x128xf32>
    %43 = vector.broadcast %42 : vector<1x128xf32> to vector<4x128xf32>
    %44 = arith.mulf %41, %43 : vector<4x128xf32>
    %c0_17 = arith.constant 0 : index
    %c0_18 = arith.constant 0 : index
    %45 = vector.load %arg4[%c0_17, %c0_18] : memref<1x128xf32, #tpu.memory_space<vmem>>, vector<1x128xf32>
    %46 = vector.broadcast %45 : vector<1x128xf32> to vector<4x128xf32>
    %47 = arith.addf %44, %46 : vector<4x128xf32>
    %cst_19 = arith.constant 0.000000e+00 : f32
    %48 = vector.broadcast %cst_19 : f32 to vector<4x128xf32>
    %49 = arith.maximumf %47, %48 : vector<4x128xf32>
    %50 = arith.truncf %49 : vector<4x128xf32> to vector<4x128xbf16>
    %c0_20 = arith.constant 0 : index
    %c0_21 = arith.constant 0 : index
    %51 = vector.load %arg5[%c0_20, %c0_21] : memref<128x128xbf16, #tpu.memory_space<vmem>>, vector<128x128xbf16>
    %cst_22 = arith.constant dense<0.000000e+00> : vector<4x128xf32>
    %52 = tpu.matmul %50, %51, %cst_22 {dimension_numbers = #tpu.dot_dimension_numbers<[1], [0], [0], [1], [0, 0, 1, 1], [], []>} : vector<4x128xbf16>, vector<128x128xbf16>, vector<4x128xf32> -> vector<4x128xf32>
    %c0_23 = arith.constant 0 : index
    %c0_24 = arith.constant 0 : index
    %53 = vector.load %arg6[%c0_23, %c0_24] : memref<1x128xf32, #tpu.memory_space<vmem>>, vector<1x128xf32>
    %54 = vector.broadcast %53 : vector<1x128xf32> to vector<4x128xf32>
    %55 = arith.addf %52, %54 : vector<4x128xf32>
    %56 = arith.mulf %55, %55 : vector<4x128xf32>
    %cst_25 = arith.constant dense<0.000000e+00> : vector<4xf32>
    %57 = vector.multi_reduction <add>, %56, %cst_25 [1] : vector<4x128xf32> to vector<4xf32>
    %58 = vector.shape_cast %57 : vector<4xf32> to vector<4x1xf32>
    %cst_26 = arith.constant 1.000000e-24 : f32
    %59 = vector.broadcast %cst_26 : f32 to vector<4x1xf32>
    %60 = arith.maximumf %58, %59 : vector<4x1xf32>
    %61 = math.rsqrt %60 : vector<4x1xf32>
    %62 = vector.broadcast %61 : vector<4x1xf32> to vector<4x128xf32>
    %63 = arith.mulf %55, %62 : vector<4x128xf32>
    %c0_27 = arith.constant 0 : index
    %c0_28 = arith.constant 0 : index
    %64 = vector.load %arg7[%c0_27, %c0_28] : memref<4x128xf32, #tpu.memory_space<vmem>>, vector<4x128xf32>
    tpu.vector_store %arg7[%c0_27, %c0_28], %63 {strides = array<i32>} : memref<4x128xf32, #tpu.memory_space<vmem>>, vector<4x128xf32>,
    return
  }
}

</mosaic_0001>

<llo_original>
// kernel: supcont_forward.3
$region0: #{supcont_forward.3}
  #allocation0 [shape = 'u32[]', space=smem, size = 0x4, offset = 0x4, fixed_abs, tag = 'smem constant byte address 0x4 - core index']
  #allocation1 [shape = 'u32[144,128]{1,0:T(1,128)}', space=vmem, size = 0x12000, scoped, tag = 'internal scratch']
  %s0 = inlined_call_operand.vmem [shape: f32[4,128], index: 0, kind: input, shape index: {}]
  %s1 = inlined_call_operand.vmem [shape: bf16[128,128], index: 1, kind: input, shape index: {}]
  %s2 = inlined_call_operand.vmem [shape: f32[1,128], index: 2, kind: input, shape index: {}]
  %s3 = inlined_call_operand.vmem [shape: f32[1,128], index: 3, kind: input, shape index: {}]
  %s4 = inlined_call_operand.vmem [shape: f32[1,128], index: 4, kind: input, shape index: {}]
  %s5 = inlined_call_operand.vmem [shape: bf16[128,128], index: 5, kind: input, shape index: {}]
  %s6 = inlined_call_operand.vmem [shape: f32[1,128], index: 6, kind: input, shape index: {}]
  %s7 = inlined_call_operand.vmem [shape: f32[4,128], index: 7, kind: output, shape index: {}]
  %s8 = sld [smem:[#allocation0]]
  $region38: #{supcont_forward.3} parent=0
    _
  %s10 = ssub.s32 1, %s8
  %s11 = scalar_select 0, %s10, %s8
  // Predicated region
  $region2: #{supcont_forward.3} parent=0 // pred_check
    _
  $region3: #{supcont_forward.3} parent=0 // pred_check_branch
    %13 = sbr.rel (0) target = $region5
  $region4: #{supcont_forward.3} parent=0 // pred_region
    _
  $region5: #{supcont_forward.3} parent=0 // pred_fallthru
    _
  // Predicated region
  $region6: #{supcont_forward.3} parent=0 // pred_check
    _
  $region7: #{supcont_forward.3} parent=0 // pred_check_branch
    %15 = sbr.rel (0) target = $region9
  $region8: #{supcont_forward.3} parent=0 // pred_region
    _
  $region9: #{supcont_forward.3} parent=0 // pred_fallthru
    _
  // Predicated region
  $region10: #{supcont_forward.3} parent=0 // pred_check
    _
  $region11: #{supcont_forward.3} parent=0 // pred_check_branch
    %17 = sbr.rel (0) target = $region13
  $region12: #{supcont_forward.3} parent=0 // pred_region
    _
  $region13: #{supcont_forward.3} parent=0 // pred_fallthru
    _
  // Predicated region
  $region14: #{supcont_forward.3} parent=0 // pred_check
    _
  $region15: #{supcont_forward.3} parent=0 // pred_check_branch
    %19 = sbr.rel (0) target = $region17
  $region16: #{supcont_forward.3} parent=0 // pred_region
    _
  $region17: #{supcont_forward.3} parent=0 // pred_fallthru
    _
  // Predicated region
  $region18: #{supcont_forward.3} parent=0 // pred_check
    _
  $region19: #{supcont_forward.3} parent=0 // pred_check_branch
    %21 = sbr.rel (0) target = $region21
  $region20: #{supcont_forward.3} parent=0 // pred_region
    _
  $region21: #{supcont_forward.3} parent=0 // pred_fallthru
    _
  // Predicated region
  $region22: #{supcont_forward.3} parent=0 // pred_check
    _
  $region23: #{supcont_forward.3} parent=0 // pred_check_branch
    %23 = sbr.rel (0) target = $region25
  $region24: #{supcont_forward.3} parent=0 // pred_region
    _
  $region25: #{supcont_forward.3} parent=0 // pred_fallthru
    _
  // Predicated region
  $region26: #{supcont_forward.3} parent=0 // pred_check
    _
  $region27: #{supcont_forward.3} parent=0 // pred_check_branch
    %25 = sbr.rel (0) target = $region29
  $region28: #{supcont_forward.3} parent=0 // pred_region
    _
  $region29: #{supcont_forward.3} parent=0 // pred_fallthru
    _
  %v27 = vld [vmem:[%s0] sm:$0xf]
  %v28 = vpack.c.bf16 %v27, %v27
  %v29 = vld [vmem:[%s1] sm:$0xf]
  %v30 = vld [vmem:[%s1 + $0x4] sm:$0xf]
  %v31 = vld [vmem:[%s1 + $0x8] sm:$0xf]
  %v32 = vld [vmem:[%s1 + $0xc] sm:$0xf]
  %v33 = vld [vmem:[%s1 + $0x10] sm:$0xf]
  %v34 = vld [vmem:[%s1 + $0x14] sm:$0xf]
  %v35 = vld [vmem:[%s1 + $0x18] sm:$0xf]
  %v36 = vld [vmem:[%s1 + $0x1c] sm:$0xf]
  %v37 = vld [vmem:[%s1 + $0x20] sm:$0xf]
  %v38 = vld [vmem:[%s1 + $0x24] sm:$0xf]
  %v39 = vld [vmem:[%s1 + $0x28] sm:$0xf]
  %v40 = vld [vmem:[%s1 + $0x2c] sm:$0xf]
  %v41 = vld [vmem:[%s1 + $0x30] sm:$0xf]
  %v42 = vld [vmem:[%s1 + $0x34] sm:$0xf]
  %v43 = vld [vmem:[%s1 + $0x38] sm:$0xf]
  %v44 = vld [vmem:[%s1 + $0x3c] sm:$0xf]
  %v45 = vld [vmem:[%s2] sm:$0x1]
  %v47 = vlaneseq
  %v48 = vshrl.u32 %v47, 7
  %v49 = vsub.s32 0, %v48
  %v50 = vrot.slane %v45, %v49
  %v68 = vunpack.c.l.b16 %v29
  %v69 = vunpack.c.l.b16 %v30
  %v70 = vunpack.c.l.b16 %v31
  %v71 = vunpack.c.l.b16 %v32
  %v72 = vunpack.c.l.b16 %v33
  %v73 = vunpack.c.l.b16 %v34
  %v74 = vunpack.c.l.b16 %v35
  %v75 = vunpack.c.l.b16 %v36
  %v76 = vunpack.c.l.b16 %v37
  %v77 = vunpack.c.l.b16 %v38
  %v78 = vunpack.c.l.b16 %v39
  %v79 = vunpack.c.l.b16 %v40
  %v80 = vunpack.c.l.b16 %v41
  %v81 = vunpack.c.l.b16 %v42
  %v82 = vunpack.c.l.b16 %v43
  %v83 = vunpack.c.l.b16 %v44
  %v84 = vpack.c.b16 %v69, %v68
  %v85 = vpack.c.b16 %v71, %v70
  %v86 = vpack.c.b16 %v73, %v72
  %v87 = vpack.c.b16 %v75, %v74
  %v88 = vpack.c.b16 %v77, %v76
  %v89 = vpack.c.b16 %v79, %v78
  %v90 = vpack.c.b16 %v81, %v80
  %v91 = vpack.c.b16 %v83, %v82
  %100 = vmatprep.subr.bf16.mxu0 0
  %101 = vmatpush1.bf16.msra.mxu0 %v84
  %102 = vmatprep.subr.bf16.mxu0 0
  %103 = vmatpush1.bf16.msra.mxu0 %v85
  %104 = vmatprep.subr.bf16.mxu0 0
  %105 = vmatpush1.bf16.msra.mxu0 %v86
  %106 = vmatprep.subr.bf16.mxu0 0
  %107 = vmatpush1.bf16.msra.mxu0 %v87
  %108 = vmatprep.subr.bf16.mxu0 0
  %109 = vmatpush1.bf16.msra.mxu0 %v88
  %110 = vmatprep.subr.bf16.mxu0 0
  %111 = vmatpush1.bf16.msra.mxu0 %v89
  %112 = vmatprep.subr.bf16.mxu0 0
  %113 = vmatpush1.bf16.msra.mxu0 %v90
  %114 = vmatprep.subr.bf16.mxu0 0
  %115 = vmatpush1.bf16.msra.mxu0 %v91
  %116 = vmatprep.subr.bf16.mxu0 0
  %117 = vmatpush1.bf16.msra.mxu0 0
  %118 = vmatprep.subr.bf16.mxu0 0
  %119 = vmatpush1.bf16.msra.mxu0 0
  %120 = vmatprep.subr.bf16.mxu0 0
  %121 = vmatpush1.bf16.msra.mxu0 0
  %122 = vmatprep.subr.bf16.mxu0 0
  %123 = vmatpush1.bf16.msra.mxu0 0
  %124 = vmatprep.subr.bf16.mxu0 0
  %125 = vmatpush1.bf16.msra.mxu0 0
  %126 = vmatprep.subr.bf16.mxu0 0
  %127 = vmatpush1.bf16.msra.mxu0 0
  %128 = vmatprep.subr.bf16.mxu0 0
  %129 = vmatpush1.bf16.msra.mxu0 0
  %130 = vmatprep.subr.bf16.mxu0 0
  %131 = vmatpush1.bf16.msra.mxu0 0
  %132 = vmatprep.mubr.bf16.mxu0 0
  %133 = vmatmul.mubr.bf16.gmra.mrb[0].mxu0 %v28
  %v134 = vpop.f32.mrb[0].mxu0
  %v135 = vadd.f32 %v50, %v134
  %v136 = vpop.f32.mrb[0].mxu0
  %v137 = vpop.f32.mrb[0].mxu0
  %v138 = vpop.f32.mrb[0].mxu0
  %139 = vdwg.mxu0
  %vm140 = vcmask 1041408
  %v141 = vsel %vm140, %v135, 0.0
  %v142 = vrot.slane %v141, 4
  %v143 = vadd.f32 %v141, %v142
  %v144 = vrot.slane %v143, 2
  %v145 = vadd.f32 %v143, %v144
  %v146 = vrot.slane %v145, 1
  %v147 = vadd.f32 %v145, %v146
  %v148 = vrcp.pop 2.0
  %v149 = vmul.f32 %v147, %v148
  %v150 = vsub.f32 %v135, %v149
  %v151 = vmul.f32 %v150, %v150
  %v152 = vsel %vm140, %v151, 0.0
  %v153 = vrot.slane %v152, 4
  %v154 = vadd.f32 %v152, %v153
  %v155 = vrot.slane %v154, 2
  %v156 = vadd.f32 %v154, %v155
  %v157 = vrot.slane %v156, 1
  %v158 = vadd.f32 %v156, %v157
  %v159 = vmul.f32 %v158, %v148
  %v160 = vadd.f32 %v159, 1e-05
  %v161 = vrsqrt.pop %v160
  %v162 = vmul.f32 %v150, %v161
  %v164 = vrot.slane %v135, 2
  %v166 = vsel %vm140, %v164, 0.0
  %v167 = vrot.slane %v166, 4
  %v168 = vadd.f32 %v166, %v167
  %v169 = vrot.slane %v168, 2
  %v170 = vadd.f32 %v168, %v169
  %v171 = vrot.slane %v170, 1
  %v172 = vadd.f32 %v170, %v171
  %v173 = vmul.f32 %v172, %v148
  %v174 = vsub.f32 %v135, %v173
  %v175 = vmul.f32 %v174, %v174
  %v177 = vrot.slane %v175, 2
  %v179 = vsel %vm140, %v177, 0.0
  %v180 = vrot.slane %v179, 4
  %v181 = vadd.f32 %v179, %v180
  %v182 = vrot.slane %v181, 2
  %v183 = vadd.f32 %v181, %v182
  %v184 = vrot.slane %v183, 1
  %v185 = vadd.f32 %v183, %v184
  %v186 = vmul.f32 %v185, %v148
  %v187 = vadd.f32 %v186, 1e-05
  %v188 = vrsqrt.pop %v187
  %v189 = vmul.f32 %v174, %v188
  %v190 = vsel %vm140, %v162, %v189
  %v191 = vld [vmem:[%s3] sm:$0x1]
  %v193 = vlaneseq
  %v194 = vshrl.u32 %v193, 7
  %v195 = vsub.s32 0, %v194
  %v196 = vrot.slane %v191, %v195
  %v198 = vmul.f32 %v190, %v196
  %v199 = vld [vmem:[%s4] sm:$0x1]
  %v201 = vlaneseq
  %v202 = vshrl.u32 %v201, 7
  %v203 = vsub.s32 0, %v202
  %v204 = vrot.slane %v199, %v203
  %v206 = vadd.f32 %v198, %v204
  %v207 = vmax.f32 %v206, 0.0
  %v208 = vpack.c.bf16 %v207, %v207
  %v209 = vld [vmem:[%s5] sm:$0xf]
  %v210 = vld [vmem:[%s5 + $0x4] sm:$0xf]
  %v211 = vld [vmem:[%s5 + $0x8] sm:$0xf]
  %v212 = vld [vmem:[%s5 + $0xc] sm:$0xf]
  %v213 = vld [vmem:[%s5 + $0x10] sm:$0xf]
  %v214 = vld [vmem:[%s5 + $0x14] sm:$0xf]
  %v215 = vld [vmem:[%s5 + $0x18] sm:$0xf]
  %v216 = vld [vmem:[%s5 + $0x1c] sm:$0xf]
  %v217 = vld [vmem:[%s5 + $0x20] sm:$0xf]
  %v218 = vld [vmem:[%s5 + $0x24] sm:$0xf]
  %v219 = vld [vmem:[%s5 + $0x28] sm:$0xf]
  %v220 = vld [vmem:[%s5 + $0x2c] sm:$0xf]
  %v221 = vld [vmem:[%s5 + $0x30] sm:$0xf]
  %v222 = vld [vmem:[%s5 + $0x34] sm:$0xf]
  %v223 = vld [vmem:[%s5 + $0x38] sm:$0xf]
  %v224 = vld [vmem:[%s5 + $0x3c] sm:$0xf]
  %v225 = vld [vmem:[%s6] sm:$0x1]
  %v227 = vlaneseq
  %v228 = vshrl.u32 %v227, 7
  %v229 = vsub.s32 0, %v228
  %v230 = vrot.slane %v225, %v229
  %v248 = vunpack.c.l.b16 %v209
  %v249 = vunpack.c.l.b16 %v210
  %v250 = vunpack.c.l.b16 %v211
  %v251 = vunpack.c.l.b16 %v212
  %v252 = vunpack.c.l.b16 %v213
  %v253 = vunpack.c.l.b16 %v214
  %v254 = vunpack.c.l.b16 %v215
  %v255 = vunpack.c.l.b16 %v216
  %v256 = vunpack.c.l.b16 %v217
  %v257 = vunpack.c.l.b16 %v218
  %v258 = vunpack.c.l.b16 %v219
  %v259 = vunpack.c.l.b16 %v220
  %v260 = vunpack.c.l.b16 %v221
  %v261 = vunpack.c.l.b16 %v222
  %v262 = vunpack.c.l.b16 %v223
  %v263 = vunpack.c.l.b16 %v224
  %v264 = vpack.c.b16 %v249, %v248
  %v265 = vpack.c.b16 %v251, %v250
  %v266 = vpack.c.b16 %v253, %v252
  %v267 = vpack.c.b16 %v255, %v254
  %v268 = vpack.c.b16 %v257, %v256
  %v269 = vpack.c.b16 %v259, %v258
  %v270 = vpack.c.b16 %v261, %v260
  %v271 = vpack.c.b16 %v263, %v262
  %280 = vmatprep.subr.bf16.mxu0 0
  %281 = vmatpush1.bf16.msra.mxu0 %v264
  %282 = vmatprep.subr.bf16.mxu0 0
  %283 = vmatpush1.bf16.msra.mxu0 %v265
  %284 = vmatprep.subr.bf16.mxu0 0
  %285 = vmatpush1.bf16.msra.mxu0 %v266
  %286 = vmatprep.subr.bf16.mxu0 0
  %287 = vmatpush1.bf16.msra.mxu0 %v267
  %288 = vmatprep.subr.bf16.mxu0 0
  %289 = vmatpush1.bf16.msra.mxu0 %v268
  %290 = vmatprep.subr.bf16.mxu0 0
  %291 = vmatpush1.bf16.msra.mxu0 %v269
  %292 = vmatprep.subr.bf16.mxu0 0
  %293 = vmatpush1.bf16.msra.mxu0 %v270
  %294 = vmatprep.subr.bf16.mxu0 0
  %295 = vmatpush1.bf16.msra.mxu0 %v271
  %296 = vmatprep.subr.bf16.mxu0 0
  %297 = vmatpush1.bf16.msra.mxu0 0
  %298 = vmatprep.subr.bf16.mxu0 0
  %299 = vmatpush1.bf16.msra.mxu0 0
  %300 = vmatprep.subr.bf16.mxu0 0
  %301 = vmatpush1.bf16.msra.mxu0 0
  %302 = vmatprep.subr.bf16.mxu0 0
  %303 = vmatpush1.bf16.msra.mxu0 0
  %304 = vmatprep.subr.bf16.mxu0 0
  %305 = vmatpush1.bf16.msra.mxu0 0
  %306 = vmatprep.subr.bf16.mxu0 0
  %307 = vmatpush1.bf16.msra.mxu0 0
  %308 = vmatprep.subr.bf16.mxu0 0
  %309 = vmatpush1.bf16.msra.mxu0 0
  %310 = vmatprep.subr.bf16.mxu0 0
  %311 = vmatpush1.bf16.msra.mxu0 0
  %312 = vmatprep.mubr.bf16.mxu0 0
  %313 = vmatmul.mubr.bf16.gmra.mrb[0].mxu0 %v208
  %v314 = vpop.f32.mrb[0].mxu0
  %v315 = vadd.f32 %v230, %v314
  %v316 = vpop.f32.mrb[0].mxu0
  %v317 = vpop.f32.mrb[0].mxu0
  %v318 = vpop.f32.mrb[0].mxu0
  %319 = vdwg.mxu0
  %v320 = vmul.f32 %v315, %v315
  %vm321 = vcmask 1043456
  %v322 = vsel %vm321, %v320, 0.0
  %323 = vadd.xlane.f32.xlu0 %v322
  %v324 = vpop.xlane.xlu0 %323
  %v325 = vmax.f32 %v324, 1e-24
  %v326 = vrsqrt.pop %v325
  %v327 = vmul.f32 %v315, %v326
  %328 = vst [vmem:[%s7] sm:$0xf] %v327
  // Predicated region
  $region30: #{supcont_forward.3} parent=0 // pred_check
    _
  $region31: #{supcont_forward.3} parent=0 // pred_check_branch
    %330 = sbr.rel (0) target = $region33
  $region32: #{supcont_forward.3} parent=0 // pred_region
    _
  $region33: #{supcont_forward.3} parent=0 // pred_fallthru
    _
  // Predicated region
  $region34: #{supcont_forward.3} parent=0 // pred_check
    _
  $region35: #{supcont_forward.3} parent=0 // pred_check_branch
    %332 = sbr.rel (0) target = $region37
  $region36: #{supcont_forward.3} parent=0 // pred_region
    _
  $region37: #{supcont_forward.3} parent=0 // pred_fallthru
    _

// kernel: supcont_forward.2
$region0: #{supcont_forward.2}
  #allocation0 [shape = 'u32[]', space=smem, size = 0x4, offset = 0x4, fixed_abs, tag = 'smem constant byte address 0x4 - core index']
  #allocation1 [shape = 'u32[144,128]{1,0:T(1,128)}', space=vmem, size = 0x12000, scoped, tag = 'internal scratch']
  %s0 = inlined_call_operand.vmem [shape: bf16[4,256,36], index: 0, kind: input, shape index: {}]
  %s1 = inlined_call_operand.vmem [shape: bf16[36,128], index: 1, kind: input, shape index: {}]
  %s2 = inlined_call_operand.vmem [shape: f32[1,128], index: 2, kind: input, shape index: {}]
  %s3 = inlined_call_operand.vmem [shape: f32[4,512], index: 3, kind: input, shape index: {}]
  %s4 = inlined_call_operand.vmem [shape: f32[4,128], index: 4, kind: output, shape index: {}]
  %s5 = sld [smem:[#allocation0]]
  $region94: #{supcont_forward.2} parent=0
    _
  %s7 = ssub.s32 1, %s5
  %s8 = scalar_select 0, %s7, %s5
  $region1: #{supcont_forward.2} parent=0
    #allocation2 [shape = 'u8[262144]{0}', space=vmem, size = 0x40000, scoped, tag = 'input window, operand 0']
    loop: start=0, step=1, limit=4
    $region2: #{supcont_forward.2} parent=1 // loop_pre_header
      _
    $region3: #{supcont_forward.2} parent=1 // loop_header
      %s10 = sphi 0, %s14
      %p11 = scmp.ge.s32.totalorder %s10, 4
      %s17 = sphi 0, %s29
      %s18 = sphi 0, %s25
      %s19 = sphi 0, %s17
      %s20 = sphi 0, %s18
      %s21 = sphi 0, %s19
      %s22 = sphi 0, %s20
      %s34 = sphi 0, %s36
      %s37 = sphi 0, %s34
      %s38 = sphi 0, %s37
      %s54 = sphi 0, %s38
      %s58 = sphi 0, %s58
      %s60 = sphi 0, %s58
      %s61 = sphi 0, %s60
      %s75 = sphi 0, %s61
      %s79 = sphi 0, %s79
      %s81 = sphi 0, %s79
      %s82 = sphi 0, %s81
      %s96 = sphi 0, %s82
      %s100 = sphi 0, %s100
      %s102 = sphi 0, %s100
      %s103 = sphi 0, %s102
      %s117 = sphi 0, %s103
      %s123 = sphi 0, %s125
      %s126 = sphi 0, %s123
      %s127 = sphi 0, %s126
      %s143 = sphi 0, %s127
    $region4: #{supcont_forward.2} parent=1 // loop_header_branch
      %13 = sbr.rel (%p11) target = $region8
    $region5: #{supcont_forward.2} parent=1 // loop_body
      %s15 = ssub.s32 %s10, 1
      %s16 = ssub.s32 %s10, 2
      %s23 = sadd.s32 1, %s18
      %p24 = scmp.ge.s32.totalorder %s23, 2
      %s25 = scalar_select %p24, 0, %s23
      %s26 = sadd.s32 1, %s17
      %s27 = scalar_select %p24, %s26, %s17
      %p28 = scmp.ge.s32.totalorder %s27, 1
      %s29 = scalar_select %p28, 0, %s27
      %s30 = ssub.s32 %s17, %s29
      %s31 = ssub.s32 %s18, %s25
      %s32 = sor.u32 %s30, %s31
      %p33 = scmp.eq.s32.totalorder %s32, 0
      %s35 = sadd.s32 %s34, 1
      %s36 = scalar_select %p33, %s34, %s35
      %p39 = pneg %p33
      %p40 = scmp.eq.s32.totalorder %s10, 1
      %p41 = por %p39, %p40
      %p42 = scmp.ne.s32.totalorder %s34, %s37
      %p43 = scmp.eq.s32.totalorder %s10, 0
      %p44 = por %p42, %p43
      %p45 = scmp.ne.s32.totalorder %s34, %s37
      %p46 = scmp.eq.s32.totalorder %s15, 1
      %p47 = por %p45, %p46
      %p48 = scmp.ne.s32.totalorder %s37, %s38
      %p49 = scmp.eq.s32.totalorder %s15, 0
      %p50 = por %p48, %p49
      %p51 = scmp.ne.s32.totalorder %s37, %s38
      %p52 = scmp.eq.s32.totalorder %s16, 1
      %p53 = por %p51, %p52
      %p55 = scmp.ne.s32.totalorder %s38, %s54
      %p56 = scmp.eq.s32.totalorder %s16, 0
      %p57 = por %p55, %p56
      %s59 = sadd.s32 %s58, 1
      %p62 = scmp.eq.s32.totalorder %s10, 1
      %p63 = scmp.ne.s32.totalorder %s58, %s60
      %p64 = scmp.eq.s32.totalorder %s10, 0
      %p65 = por %p63, %p64
      %p66 = scmp.ne.s32.totalorder %s58, %s60
      %p67 = scmp.eq.s32.totalorder %s15, 1
      %p68 = por %p66, %p67
      %p69 = scmp.ne.s32.totalorder %s60, %s61
      %p70 = scmp.eq.s32.totalorder %s15, 0
      %p71 = por %p69, %p70
      %p72 = scmp.ne.s32.totalorder %s60, %s61
      %p73 = scmp.eq.s32.totalorder %s16, 1
      %p74 = por %p72, %p73
      %p76 = scmp.ne.s32.totalorder %s61, %s75
      %p77 = scmp.eq.s32.totalorder %s16, 0
      %p78 = por %p76, %p77
      %s80 = sadd.s32 %s79, 1
      %p83 = scmp.eq.s32.totalorder %s10, 1
      %p84 = scmp.ne.s32.totalorder %s79, %s81
      %p85 = scmp.eq.s32.totalorder %s10, 0
      %p86 = por %p84, %p85
      %p87 = scmp.ne.s32.totalorder %s79, %s81
      %p88 = scmp.eq.s32.totalorder %s15, 1
      %p89 = por %p87, %p88
      %p90 = scmp.ne.s32.totalorder %s81, %s82
      %p91 = scmp.eq.s32.totalorder %s15, 0
      %p92 = por %p90, %p91
      %p93 = scmp.ne.s32.totalorder %s81, %s82
      %p94 = scmp.eq.s32.totalorder %s16, 1
      %p95 = por %p93, %p94
      %p97 = scmp.ne.s32.totalorder %s82, %s96
      %p98 = scmp.eq.s32.totalorder %s16, 0
      %p99 = por %p97, %p98
      %s101 = sadd.s32 %s100, 1
      %p104 = scmp.eq.s32.totalorder %s10, 1
      %p105 = scmp.ne.s32.totalorder %s100, %s102
      %p106 = scmp.eq.s32.totalorder %s10, 0
      %p107 = por %p105, %p106
      %p108 = scmp.ne.s32.totalorder %s100, %s102
      %p109 = scmp.eq.s32.totalorder %s15, 1
      %p110 = por %p108, %p109
      %p111 = scmp.ne.s32.totalorder %s102, %s103
      %p112 = scmp.eq.s32.totalorder %s15, 0
      %p113 = por %p111, %p112
      %p114 = scmp.ne.s32.totalorder %s102, %s103
      %p115 = scmp.eq.s32.totalorder %s16, 1
      %p116 = por %p114, %p115
      %p118 = scmp.ne.s32.totalorder %s103, %s117
      %p119 = scmp.eq.s32.totalorder %s16, 0
      %p120 = por %p118, %p119
      %s121 = ssub.s32 %s17, %s29
      %p122 = scmp.eq.s32.totalorder %s121, 0
      %s124 = sadd.s32 %s123, 1
      %s125 = scalar_select %p122, %s123, %s124
      %p128 = pneg %p122
      %p129 = scmp.eq.s32.totalorder %s10, 1
      %p130 = por %p128, %p129
      %p131 = scmp.ne.s32.totalorder %s123, %s126
      %p132 = scmp.eq.s32.totalorder %s10, 0
      %p133 = por %p131, %p132
      %p134 = scmp.ne.s32.totalorder %s123, %s126
      %p135 = scmp.eq.s32.totalorder %s15, 1
      %p136 = por %p134, %p135
      %p137 = scmp.ne.s32.totalorder %s126, %s127
      %p138 = scmp.eq.s32.totalorder %s15, 0
      %p139 = por %p137, %p138
      %p140 = scmp.ne.s32.totalorder %s126, %s127
      %p141 = scmp.eq.s32.totalorder %s16, 1
      %p142 = por %p140, %p141
      %p144 = scmp.ne.s32.totalorder %s127, %s143
      %p145 = scmp.eq.s32.totalorder %s16, 0
      %p146 = por %p144, %p145
      %p147 = scmp.le.s32.totalorder 1, %s10
      %p148 = scmp.lt.s32.totalorder %s10, 3
      %p149 = pnand %p147, %p148
      %p150 = pneg %p149
      // Predicated region
      $region9: #{supcont_forward.2} parent=5 // pred_check
        _
      $region10: #{supcont_forward.2} parent=5 // pred_check_branch
        %152 = sbr.rel (%p149) target = $region12
      $region11: #{supcont_forward.2} parent=5 // pred_region
        %s153 = ssub.s32 %s10, 1
        // Predicated region
        $region13: #{supcont_forward.2} parent=11 // pred_check
          %p154 = pneg %p71
        $region14: #{supcont_forward.2} parent=11 // pred_check_branch
          %156 = sbr.rel (%p154) target = $region16
        $region15: #{supcont_forward.2} parent=11 // pred_region
          _
        $region16: #{supcont_forward.2} parent=11 // pred_fallthru
          _
        // Predicated region
        $region17: #{supcont_forward.2} parent=11 // pred_check
          %p157 = pneg %p92
        $region18: #{supcont_forward.2} parent=11 // pred_check_branch
          %159 = sbr.rel (%p157) target = $region20
        $region19: #{supcont_forward.2} parent=11 // pred_region
          _
        $region20: #{supcont_forward.2} parent=11 // pred_fallthru
          _
        // Predicated region
        $region21: #{supcont_forward.2} parent=11 // pred_check
          %p160 = pneg %p113
        $region22: #{supcont_forward.2} parent=11 // pred_check_branch
          %162 = sbr.rel (%p160) target = $region24
        $region23: #{supcont_forward.2} parent=11 // pred_region
          _
        $region24: #{supcont_forward.2} parent=11 // pred_fallthru
          _
      $region12: #{supcont_forward.2} parent=5 // pred_fallthru
        _
      %p163 = scmp.lt.s32.totalorder %s10, 2
      // Predicated region
      $region25: #{supcont_forward.2} parent=5 // pred_check
        %p164 = pneg %p163
      $region26: #{supcont_forward.2} parent=5 // pred_check_branch
        %166 = sbr.rel (%p164) target = $region28
      $region27: #{supcont_forward.2} parent=5 // pred_region
        // Predicated region
        $region29: #{supcont_forward.2} parent=27 // pred_check
          %p167 = pneg %p44
        $region30: #{supcont_forward.2} parent=27 // pred_check_branch
          %169 = sbr.rel (%p167) target = $region32
        $region31: #{supcont_forward.2} parent=27 // pred_region
          %s170 = sand.u32 %s34, 1
          %s171 = sand.u32 %s34, 1
          %s172 = smul.addr %s171, 256
          %s173 = scalar_lea.vmem [#allocation2], %s172
          %s174 = smul.u32 4, %s17
          %s175 = smul.u32 16, %s18
          %s176 = smul.addr %s174, 32
          %s177 = sadd.s32 %s175, %s176
          %s178 = smul.addr %s177, 4
          %s179 = scalar_lea.vmem %s0, %s178
          // Predicated region
          $region33: #{supcont_forward.2} parent=31 // pred_check
            _
          $region34: #{supcont_forward.2} parent=31 // pred_check_branch
            %181 = sbr.rel (0) target = $region36
          $region35: #{supcont_forward.2} parent=31 // pred_region
            // Predicated region
            $region37: #{supcont_forward.2} parent=35 // pred_check
              _
            $region38: #{supcont_forward.2} parent=35 // pred_check_branch
              %183 = sbr.rel target = $region40
            $region39: #{supcont_forward.2} parent=35 // pred_region
              // Predicated region
              $region52: #{supcont_forward.2} parent=39 // pred_check
                _
              $region53: #{supcont_forward.2} parent=39 // pred_check_branch
                %324 = sbr.rel (0) target = $region55
              $region54: #{supcont_forward.2} parent=39 // pred_region
                loop: start=0, step=1, limit=1
                $region56: #{supcont_forward.2} parent=54 // loop_pre_header
                  _
                $region57: #{supcont_forward.2} parent=54 // loop_header
                  %s326 = sphi 0, %s330
                  %p327 = scmp.ge.s32.totalorder %s326, 1
                  %s331 = sphi %s179, %s179
                  %s332 = sphi %s173, %s173
                $region58: #{supcont_forward.2} parent=54 // loop_header_branch
                  %329 = sbr.rel (%p327) target = $region62
                $region59: #{supcont_forward.2} parent=54 // loop_body
                  _
                $region60: #{supcont_forward.2} parent=54 // loop_footer
                  %s330 = sadd.s32 1, %s326
                $region61: #{supcont_forward.2} parent=54 // loop_footer_branch
                  %325 = sbr.rel target = $region57
                $region62: #{supcont_forward.2} parent=54 // loop_exit
                  _
                loop: start=0, step=1, limit=1
                $region63: #{supcont_forward.2} parent=54 // loop_pre_header
                  _
                $region64: #{supcont_forward.2} parent=54 // loop_header
                  %s335 = sphi 0, %s339
                  %p336 = scmp.ge.s32.totalorder %s335, 1
                  %s340 = sphi %s179, %s179
                  %s341 = sphi %s173, %s173
                $region65: #{supcont_forward.2} parent=54 // loop_header_branch
                  %338 = sbr.rel (%p336) target = $region69
                $region66: #{supcont_forward.2} parent=54 // loop_body
                  %v342 = vld [vmem:[%s340] sm:$0xf]
                  %343 = vst [vmem:[%s341] sm:$0xf] %v342
                  %v344 = vld [vmem:[%s340 + $0x4] sm:$0xf]
                  %345 = vst [vmem:[%s341 + $0x4] sm:$0xf] %v344
                  %v346 = vld [vmem:[%s340 + $0x8] sm:$0xf]
                  %347 = vst [vmem:[%s341 + $0x8] sm:$0xf] %v346
                  %v348 = vld [vmem:[%s340 + $0xc] sm:$0xf]
                  %349 = vst [vmem:[%s341 + $0xc] sm:$0xf] %v348
                  %v350 = vld [vmem:[%s340 + $0x10] sm:$0xf]
                  %351 = vst [vmem:[%s341 + $0x10] sm:$0xf] %v350
                  %v352 = vld [vmem:[%s340 + $0x14] sm:$0xf]
                  %353 = vst [vmem:[%s341 + $0x14] sm:$0xf] %v352
                  %v354 = vld [vmem:[%s340 + $0x18] sm:$0xf]
                  %355 = vst [vmem:[%s341 + $0x18] sm:$0xf] %v354
                  %v356 = vld [vmem:[%s340 + $0x1c] sm:$0xf]
                  %357 = vst [vmem:[%s341 + $0x1c] sm:$0xf] %v356
                  %v358 = vld [vmem:[%s340 + $0x20] sm:$0xf]
                  %359 = vst [vmem:[%s341 + $0x20] sm:$0xf] %v358
                  %v360 = vld [vmem:[%s340 + $0x24] sm:$0xf]
                  %361 = vst [vmem:[%s341 + $0x24] sm:$0xf] %v360
                  %v362 = vld [vmem:[%s340 + $0x28] sm:$0xf]
                  %363 = vst [vmem:[%s341 + $0x28] sm:$0xf] %v362
                  %v364 = vld [vmem:[%s340 + $0x2c] sm:$0xf]
                  %365 = vst [vmem:[%s341 + $0x2c] sm:$0xf] %v364
                  %v366 = vld [vmem:[%s340 + $0x30] sm:$0xf]
                  %367 = vst [vmem:[%s341 + $0x30] sm:$0xf] %v366
                  %v368 = vld [vmem:[%s340 + $0x34] sm:$0xf]
                  %369 = vst [vmem:[%s341 + $0x34] sm:$0xf] %v368
                  %v370 = vld [vmem:[%s340 + $0x38] sm:$0xf]
                  %371 = vst [vmem:[%s341 + $0x38] sm:$0xf] %v370
                  %v372 = vld [vmem:[%s340 + $0x3c] sm:$0xf]
                  %373 = vst [vmem:[%s341 + $0x3c] sm:$0xf] %v372
                  %v374 = vld [vmem:[%s340 + $0x80] sm:$0xf]
                  %375 = vst [vmem:[%s341 + $0x40] sm:$0xf] %v374
                  %v376 = vld [vmem:[%s340 + $0x84] sm:$0xf]
                  %377 = vst [vmem:[%s341 + $0x44] sm:$0xf] %v376
                  %v378 = vld [vmem:[%s340 + $0x88] sm:$0xf]
                  %379 = vst [vmem:[%s341 + $0x48] sm:$0xf] %v378
                  %v380 = vld [vmem:[%s340 + $0x8c] sm:$0xf]
                  %381 = vst [vmem:[%s341 + $0x4c] sm:$0xf] %v380
                  %v382 = vld [vmem:[%s340 + $0x90] sm:$0xf]
                  %383 = vst [vmem:[%s341 + $0x50] sm:$0xf] %v382
                  %v384 = vld [vmem:[%s340 + $0x94] sm:$0xf]
                  %385 = vst [vmem:[%s341 + $0x54] sm:$0xf] %v384
                  %v386 = vld [vmem:[%s340 + $0x98] sm:$0xf]
                  %387 = vst [vmem:[%s341 + $0x58] sm:$0xf] %v386
                  %v388 = vld [vmem:[%s340 + $0x9c] sm:$0xf]
                  %389 = vst [vmem:[%s341 + $0x5c] sm:$0xf] %v388
                  %v390 = vld [vmem:[%s340 + $0xa0] sm:$0xf]
                  %391 = vst [vmem:[%s341 + $0x60] sm:$0xf] %v390
                  %v392 = vld [vmem:[%s340 + $0xa4] sm:$0xf]
                  %393 = vst [vmem:[%s341 + $0x64] sm:$0xf] %v392
                  %v394 = vld [vmem:[%s340 + $0xa8] sm:$0xf]
                  %395 = vst [vmem:[%s341 + $0x68] sm:$0xf] %v394
                  %v396 = vld [vmem:[%s340 + $0xac] sm:$0xf]
                  %397 = vst [vmem:[%s341 + $0x6c] sm:$0xf] %v396
                  %v398 = vld [vmem:[%s340 + $0xb0] sm:$0xf]
                  %399 = vst [vmem:[%s341 + $0x70] sm:$0xf] %v398
                  %v400 = vld [vmem:[%s340 + $0xb4] sm:$0xf]
                  %401 = vst [vmem:[%s341 + $0x74] sm:$0xf] %v400
                  %v402 = vld [vmem:[%s340 + $0xb8] sm:$0xf]
                  %403 = vst [vmem:[%s341 + $0x78] sm:$0xf] %v402
                  %v404 = vld [vmem:[%s340 + $0xbc] sm:$0xf]
                  %405 = vst [vmem:[%s341 + $0x7c] sm:$0xf] %v404
                  %v406 = vld [vmem:[%s340 + $0x100] sm:$0xf]
                  %407 = vst [vmem:[%s341 + $0x80] sm:$0xf] %v406
                  %v408 = vld [vmem:[%s340 + $0x104] sm:$0xf]
                  %409 = vst [vmem:[%s341 + $0x84] sm:$0xf] %v408
                  %v410 = vld [vmem:[%s340 + $0x108] sm:$0xf]
                  %411 = vst [vmem:[%s341 + $0x88] sm:$0xf] %v410
                  %v412 = vld [vmem:[%s340 + $0x10c] sm:$0xf]
                  %413 = vst [vmem:[%s341 + $0x8c] sm:$0xf] %v412
                  %v414 = vld [vmem:[%s340 + $0x110] sm:$0xf]
                  %415 = vst [vmem:[%s341 + $0x90] sm:$0xf] %v414
                  %v416 = vld [vmem:[%s340 + $0x114] sm:$0xf]
                  %417 = vst [vmem:[%s341 + $0x94] sm:$0xf] %v416
                  %v418 = vld [vmem:[%s340 + $0x118] sm:$0xf]
                  %419 = vst [vmem:[%s341 + $0x98] sm:$0xf] %v418
                  %v420 = vld [vmem:[%s340 + $0x11c] sm:$0xf]
                  %421 = vst [vmem:[%s341 + $0x9c] sm:$0xf] %v420
                  %v422 = vld [vmem:[%s340 + $0x120] sm:$0xf]
                  %423 = vst [vmem:[%s341 + $0xa0] sm:$0xf] %v422
                  %v424 = vld [vmem:[%s340 + $0x124] sm:$0xf]
                  %425 = vst [vmem:[%s341 + $0xa4] sm:$0xf] %v424
                  %v426 = vld [vmem:[%s340 + $0x128] sm:$0xf]
                  %427 = vst [vmem:[%s341 + $0xa8] sm:$0xf] %v426
                  %v428 = vld [vmem:[%s340 + $0x12c] sm:$0xf]
                  %429 = vst [vmem:[%s341 + $0xac] sm:$0xf] %v428
                  %v430 = vld [vmem:[%s340 + $0x130] sm:$0xf]
                  %431 = vst [vmem:[%s341 + $0xb0] sm:$0xf] %v430
                  %v432 = vld [vmem:[%s340 + $0x134] sm:$0xf]
                  %433 = vst [vmem:[%s341 + $0xb4] sm:$0xf] %v432
                  %v434 = vld [vmem:[%s340 + $0x138] sm:$0xf]
                  %435 = vst [vmem:[%s341 + $0xb8] sm:$0xf] %v434
                  %v436 = vld [vmem:[%s340 + $0x13c] sm:$0xf]
                  %437 = vst [vmem:[%s341 + $0xbc] sm:$0xf] %v436
                  %v438 = vld [vmem:[%s340 + $0x180] sm:$0xf]
                  %439 = vst [vmem:[%s341 + $0xc0] sm:$0xf] %v438
                  %v440 = vld [vmem:[%s340 + $0x184] sm:$0xf]
                  %441 = vst [vmem:[%s341 + $0xc4] sm:$0xf] %v440
                  %v442 = vld [vmem:[%s340 + $0x188] sm:$0xf]
                  %443 = vst [vmem:[%s341 + $0xc8] sm:$0xf] %v442
                  %v444 = vld [vmem:[%s340 + $0x18c] sm:$0xf]
                  %445 = vst [vmem:[%s341 + $0xcc] sm:$0xf] %v444
                  %v446 = vld [vmem:[%s340 + $0x190] sm:$0xf]
                  %447 = vst [vmem:[%s341 + $0xd0] sm:$0xf] %v446
                  %v448 = vld [vmem:[%s340 + $0x194] sm:$0xf]
                  %449 = vst [vmem:[%s341 + $0xd4] sm:$0xf] %v448
                  %v450 = vld [vmem:[%s340 + $0x198] sm:$0xf]
                  %451 = vst [vmem:[%s341 + $0xd8] sm:$0xf] %v450
                  %v452 = vld [vmem:[%s340 + $0x19c] sm:$0xf]
                  %453 = vst [vmem:[%s341 + $0xdc] sm:$0xf] %v452
                  %v454 = vld [vmem:[%s340 + $0x1a0] sm:$0xf]
                  %455 = vst [vmem:[%s341 + $0xe0] sm:$0xf] %v454
                  %v456 = vld [vmem:[%s340 + $0x1a4] sm:$0xf]
                  %457 = vst [vmem:[%s341 + $0xe4] sm:$0xf] %v456
                  %v458 = vld [vmem:[%s340 + $0x1a8] sm:$0xf]
                  %459 = vst [vmem:[%s341 + $0xe8] sm:$0xf] %v458
                  %v460 = vld [vmem:[%s340 + $0x1ac] sm:$0xf]
                  %461 = vst [vmem:[%s341 + $0xec] sm:$0xf] %v460
                  %v462 = vld [vmem:[%s340 + $0x1b0] sm:$0xf]
                  %463 = vst [vmem:[%s341 + $0xf0] sm:$0xf] %v462
                  %v464 = vld [vmem:[%s340 + $0x1b4] sm:$0xf]
                  %465 = vst [vmem:[%s341 + $0xf4] sm:$0xf] %v464
                  %v466 = vld [vmem:[%s340 + $0x1b8] sm:$0xf]
                  %467 = vst [vmem:[%s341 + $0xf8] sm:$0xf] %v466
                  %v468 = vld [vmem:[%s340 + $0x1bc] sm:$0xf]
                  %469 = vst [vmem:[%s341 + $0xfc] sm:$0xf] %v468
                $region67: #{supcont_forward.2} parent=54 // loop_footer
                  %s339 = sadd.s32 1, %s335
                $region68: #{supcont_forward.2} parent=54 // loop_footer_branch
                  %334 = sbr.rel target = $region64
                $region69: #{supcont_forward.2} parent=54 // loop_exit
                  _
              $region55: #{supcont_forward.2} parent=39 // pred_fallthru
                _
            $region40: #{supcont_forward.2} parent=35 // pred_fallthru
              _
            // Predicated region
            $region41: #{supcont_forward.2} parent=35 // pred_check
              _
            $region42: #{supcont_forward.2} parent=35 // pred_check_branch
              %185 = sbr.rel (0) target = $region44
            $region43: #{supcont_forward.2} parent=35 // pred_region
              loop: start=0, step=1, limit=1
              $region45: #{supcont_forward.2} parent=43 // loop_pre_header
                _
              $region46: #{supcont_forward.2} parent=43 // loop_header
                %s188 = sphi 0, %s192
                %p189 = scmp.ge.s32.totalorder %s188, 1
                %s193 = sphi %s179, %s179
                %s194 = sphi %s173, %s173
              $region47: #{supcont_forward.2} parent=43 // loop_header_branch
                %191 = sbr.rel (%p189) target = $region51
              $region48: #{supcont_forward.2} parent=43 // loop_body
                %v195 = vld [vmem:[%s193] sm:$0xf]
                %196 = vst [vmem:[%s194] sm:$0xf] %v195
                %v197 = vld [vmem:[%s193 + $0x4] sm:$0xf]
                %198 = vst [vmem:[%s194 + $0x4] sm:$0xf] %v197
                %v199 = vld [vmem:[%s193 + $0x8] sm:$0xf]
                %200 = vst [vmem:[%s194 + $0x8] sm:$0xf] %v199
                %v201 = vld [vmem:[%s193 + $0xc] sm:$0xf]
                %202 = vst [vmem:[%s194 + $0xc] sm:$0xf] %v201
                %v203 = vld [vmem:[%s193 + $0x10] sm:$0xf]
                %204 = vst [vmem:[%s194 + $0x10] sm:$0xf] %v203
                %v205 = vld [vmem:[%s193 + $0x14] sm:$0xf]
                %206 = vst [vmem:[%s194 + $0x14] sm:$0xf] %v205
                %v207 = vld [vmem:[%s193 + $0x18] sm:$0xf]
                %208 = vst [vmem:[%s194 + $0x18] sm:$0xf] %v207
                %v209 = vld [vmem:[%s193 + $0x1c] sm:$0xf]
                %210 = vst [vmem:[%s194 + $0x1c] sm:$0xf] %v209
                %v211 = vld [vmem:[%s193 + $0x20] sm:$0xf]
                %212 = vst [vmem:[%s194 + $0x20] sm:$0xf] %v211
                %v213 = vld [vmem:[%s193 + $0x24] sm:$0xf]
                %214 = vst [vmem:[%s194 + $0x24] sm:$0xf] %v213
                %v215 = vld [vmem:[%s193 + $0x28] sm:$0xf]
                %216 = vst [vmem:[%s194 + $0x28] sm:$0xf] %v215
                %v217 = vld [vmem:[%s193 + $0x2c] sm:$0xf]
                %218 = vst [vmem:[%s194 + $0x2c] sm:$0xf] %v217
                %v219 = vld [vmem:[%s193 + $0x30] sm:$0xf]
                %220 = vst [vmem:[%s194 + $0x30] sm:$0xf] %v219
                %v221 = vld [vmem:[%s193 + $0x34] sm:$0xf]
                %222 = vst [vmem:[%s194 + $0x34] sm:$0xf] %v221
                %v223 = vld [vmem:[%s193 + $0x38] sm:$0xf]
                %224 = vst [vmem:[%s194 + $0x38] sm:$0xf] %v223
                %v225 = vld [vmem:[%s193 + $0x3c] sm:$0xf]
                %226 = vst [vmem:[%s194 + $0x3c] sm:$0xf] %v225
                %v227 = vld [vmem:[%s193 + $0x80] sm:$0xf]
                %228 = vst [vmem:[%s194 + $0x40] sm:$0xf] %v227
                %v229 = vld [vmem:[%s193 + $0x84] sm:$0xf]
                %230 = vst [vmem:[%s194 + $0x44] sm:$0xf] %v229
                %v231 = vld [vmem:[%s193 + $0x88] sm:$0xf]
                %232 = vst [vmem:[%s194 + $0x48] sm:$0xf] %v231
                %v233 = vld [vmem:[%s193 + $0x8c] sm:$0xf]
                %234 = vst [vmem:[%s194 + $0x4c] sm:$0xf] %v233
                %v235 = vld [vmem:[%s193 + $0x90] sm:$0xf]
                %236 = vst [vmem:[%s194 + $0x50] sm:$0xf] %v235
                %v237 = vld [vmem:[%s193 + $0x94] sm:$0xf]
                %238 = vst [vmem:[%s194 + $0x54] sm:$0xf] %v237
                %v239 = vld [vmem:[%s193 + $0x98] sm:$0xf]
                %240 = vst [vmem:[%s194 + $0x58] sm:$0xf] %v239
                %v241 = vld [vmem:[%s193 + $0x9c] sm:$0xf]
                %242 = vst [vmem:[%s194 + $0x5c] sm:$0xf] %v241
                %v243 = vld [vmem:[%s193 + $0xa0] sm:$0xf]
                %244 = vst [vmem:[%s194 + $0x60] sm:$0xf] %v243
                %v245 = vld [vmem:[%s193 + $0xa4] sm:$0xf]
                %246 = vst [vmem:[%s194 + $0x64] sm:$0xf] %v245
                %v247 = vld [vmem:[%s193 + $0xa8] sm:$0xf]
                %248 = vst [vmem:[%s194 + $0x68] sm:$0xf] %v247
                %v249 = vld [vmem:[%s193 + $0xac] sm:$0xf]
                %250 = vst [vmem:[%s194 + $0x6c] sm:$0xf] %v249
                %v251 = vld [vmem:[%s193 + $0xb0] sm:$0xf]
                %252 = vst [vmem:[%s194 + $0x70] sm:$0xf] %v251
                %v253 = vld [vmem:[%s193 + $0xb4] sm:$0xf]
                %254 = vst [vmem:[%s194 + $0x74] sm:$0xf] %v253
                %v255 = vld [vmem:[%s193 + $0xb8] sm:$0xf]
                %256 = vst [vmem:[%s194 + $0x78] sm:$0xf] %v255
                %v257 = vld [vmem:[%s193 + $0xbc] sm:$0xf]
                %258 = vst [vmem:[%s194 + $0x7c] sm:$0xf] %v257
                %v259 = vld [vmem:[%s193 + $0x100] sm:$0xf]
                %260 = vst [vmem:[%s194 + $0x80] sm:$0xf] %v259
                %v261 = vld [vmem:[%s193 + $0x104] sm:$0xf]
                %262 = vst [vmem:[%s194 + $0x84] sm:$0xf] %v261
                %v263 = vld [vmem:[%s193 + $0x108] sm:$0xf]
                %264 = vst [vmem:[%s194 + $0x88] sm:$0xf] %v263
                %v265 = vld [vmem:[%s193 + $0x10c] sm:$0xf]
                %266 = vst [vmem:[%s194 + $0x8c] sm:$0xf] %v265
                %v267 = vld [vmem:[%s193 + $0x110] sm:$0xf]
                %268 = vst [vmem:[%s194 + $0x90] sm:$0xf] %v267
                %v269 = vld [vmem:[%s193 + $0x114] sm:$0xf]
                %270 = vst [vmem:[%s194 + $0x94] sm:$0xf] %v269
                %v271 = vld [vmem:[%s193 + $0x118] sm:$0xf]
                %272 = vst [vmem:[%s194 + $0x98] sm:$0xf] %v271
                %v273 = vld [vmem:[%s193 + $0x11c] sm:$0xf]
                %274 = vst [vmem:[%s194 + $0x9c] sm:$0xf] %v273
                %v275 = vld [vmem:[%s193 + $0x120] sm:$0xf]
                %276 = vst [vmem:[%s194 + $0xa0] sm:$0xf] %v275
                %v277 = vld [vmem:[%s193 + $0x124] sm:$0xf]
                %278 = vst [vmem:[%s194 + $0xa4] sm:$0xf] %v277
                %v279 = vld [vmem:[%s193 + $0x128] sm:$0xf]
                %280 = vst [vmem:[%s194 + $0xa8] sm:$0xf] %v279
                %v281 = vld [vmem:[%s193 + $0x12c] sm:$0xf]
                %282 = vst [vmem:[%s194 + $0xac] sm:$0xf] %v281
                %v283 = vld [vmem:[%s193 + $0x130] sm:$0xf]
                %284 = vst [vmem:[%s194 + $0xb0] sm:$0xf] %v283
                %v285 = vld [vmem:[%s193 + $0x134] sm:$0xf]
                %286 = vst [vmem:[%s194 + $0xb4] sm:$0xf] %v285
                %v287 = vld [vmem:[%s193 + $0x138] sm:$0xf]
                %288 = vst [vmem:[%s194 + $0xb8] sm:$0xf] %v287
                %v289 = vld [vmem:[%s193 + $0x13c] sm:$0xf]
                %290 = vst [vmem:[%s194 + $0xbc] sm:$0xf] %v289
                %v291 = vld [vmem:[%s193 + $0x180] sm:$0xf]
                %292 = vst [vmem:[%s194 + $0xc0] sm:$0xf] %v291
                %v293 = vld [vmem:[%s193 + $0x184] sm:$0xf]
                %294 = vst [vmem:[%s194 + $0xc4] sm:$0xf] %v293
                %v295 = vld [vmem:[%s193 + $0x188] sm:$0xf]
                %296 = vst [vmem:[%s194 + $0xc8] sm:$0xf] %v295
                %v297 = vld [vmem:[%s193 + $0x18c] sm:$0xf]
                %298 = vst [vmem:[%s194 + $0xcc] sm:$0xf] %v297
                %v299 = vld [vmem:[%s193 + $0x190] sm:$0xf]
                %300 = vst [vmem:[%s194 + $0xd0] sm:$0xf] %v299
                %v301 = vld [vmem:[%s193 + $0x194] sm:$0xf]
                %302 = vst [vmem:[%s194 + $0xd4] sm:$0xf] %v301
                %v303 = vld [vmem:[%s193 + $0x198] sm:$0xf]
                %304 = vst [vmem:[%s194 + $0xd8] sm:$0xf] %v303
                %v305 = vld [vmem:[%s193 + $0x19c] sm:$0xf]
                %306 = vst [vmem:[%s194 + $0xdc] sm:$0xf] %v305
                %v307 = vld [vmem:[%s193 + $0x1a0] sm:$0xf]
                %308 = vst [vmem:[%s194 + $0xe0] sm:$0xf] %v307
                %v309 = vld [vmem:[%s193 + $0x1a4] sm:$0xf]
                %310 = vst [vmem:[%s194 + $0xe4] sm:$0xf] %v309
                %v311 = vld [vmem:[%s193 + $0x1a8] sm:$0xf]
                %312 = vst [vmem:[%s194 + $0xe8] sm:$0xf] %v311
                %v313 = vld [vmem:[%s193 + $0x1ac] sm:$0xf]
                %314 = vst [vmem:[%s194 + $0xec] sm:$0xf] %v313
                %v315 = vld [vmem:[%s193 + $0x1b0] sm:$0xf]
                %316 = vst [vmem:[%s194 + $0xf0] sm:$0xf] %v315
                %v317 = vld [vmem:[%s193 + $0x1b4] sm:$0xf]
                %318 = vst [vmem:[%s194 + $0xf4] sm:$0xf] %v317
                %v319 = vld [vmem:[%s193 + $0x1b8] sm:$0xf]
                %320 = vst [vmem:[%s194 + $0xf8] sm:$0xf] %v319
                %v321 = vld [vmem:[%s193 + $0x1bc] sm:$0xf]
                %322 = vst [vmem:[%s194 + $0xfc] sm:$0xf] %v321
              $region49: #{supcont_forward.2} parent=43 // loop_footer
                %s192 = sadd.s32 1, %s188
              $region50: #{supcont_forward.2} parent=43 // loop_footer_branch
                %187 = sbr.rel target = $region46
              $region51: #{supcont_forward.2} parent=43 // loop_exit
                _
            $region44: #{supcont_forward.2} parent=35 // pred_fallthru
              _
          $region36: #{supcont_forward.2} parent=31 // pred_fallthru
            _
          %470 = vnop
        $region32: #{supcont_forward.2} parent=27 // pred_fallthru
          _
      $region28: #{supcont_forward.2} parent=5 // pred_fallthru
        _
      %p471 = scmp.le.s32.totalorder 1, %s10
      %p472 = scmp.lt.s32.totalorder %s10, 3
      %p473 = pnand %p471, %p472
      %p474 = pneg %p473
      // Predicated region
      $region70: #{supcont_forward.2} parent=5 // pred_check
        _
      $region71: #{supcont_forward.2} parent=5 // pred_check_branch
        %476 = sbr.rel (%p473) target = $region73
      $region72: #{supcont_forward.2} parent=5 // pred_region
        %s477 = ssub.s32 %s10, 1
        %s478 = sand.u32 %s37, 1
        %s479 = sand.u32 %s37, 1
        %s480 = smul.addr %s479, 256
        %s481 = scalar_lea.vmem [#allocation2], %s480
        // Predicated region
        $region74: #{supcont_forward.2} parent=72 // pred_check
          %p482 = pneg %p50
        $region75: #{supcont_forward.2} parent=72 // pred_check_branch
          %484 = sbr.rel (%p482) target = $region77
        $region76: #{supcont_forward.2} parent=72 // pred_region
          _
        $region77: #{supcont_forward.2} parent=72 // pred_fallthru
          _
        %s485 = sand.u32 %s37, 1
        %s486 = sand.u32 %s37, 1
        %s487 = smul.addr %s486, 256
        %s488 = scalar_lea.vmem [#allocation2], %s487
        %p489 = pneg %p50
        %p490 = pneg %p47
        %p491 = pneg %p71
        %p492 = pneg %p68
        %p493 = pneg %p92
        %p494 = pneg %p89
        %p495 = pneg %p113
        %p496 = pneg %p110
        %p497 = pneg %p139
        %p498 = pneg %p136
        %p499 = scmp.lt.s32.totalorder %s19, 0
        %s500 = scalar_select %p499, %s19, 0
        %s501 = smul.addr %s500, 4
        %s502 = scalar_lea.vmem %s4, %s501
        %s503 = smul.u32 4, %s19
        %s504 = smul.u32 16, %s20
        %p505 = scmp.lt.s32.totalorder %s19, 0
        %s506 = scalar_select %p505, %s19, 0
        %s507 = smul.addr %s506, 4
        %s508 = scalar_lea.vmem %s4, %s507
        %p510 = scmp.eq.s32.totalorder %s20, 0
        // Predicated region
        $region78: #{supcont_forward.2} parent=72 // pred_check
          %p511 = pneg %p510
        $region79: #{supcont_forward.2} parent=72 // pred_check_branch
          %513 = sbr.rel (%p511) target = $region81
        $region80: #{supcont_forward.2} parent=72 // pred_region
          %514 = vst [vmem:[%s508] sm:$0xf] 0.0
        $region81: #{supcont_forward.2} parent=72 // pred_fallthru
          _
        %v515 = vld [vmem:[%s481] sm:$0xf]
        %v516 = vld [vmem:[%s481 + $0x4] sm:$0xf]
        %v517 = vld [vmem:[%s481 + $0x8] sm:$0xf]
        %v518 = vld [vmem:[%s481 + $0xc] sm:$0xf]
        %v519 = vld [vmem:[%s481 + $0x10] sm:$0xf]
        %v520 = vld [vmem:[%s481 + $0x14] sm:$0xf]
        %v521 = vld [vmem:[%s481 + $0x18] sm:$0xf]
        %v522 = vld [vmem:[%s481 + $0x1c] sm:$0xf]
        %v523 = vld [vmem:[%s481 + $0x20] sm:$0xf]
        %v524 = vld [vmem:[%s481 + $0x24] sm:$0xf]
        %v525 = vld [vmem:[%s481 + $0x28] sm:$0xf]
        %v526 = vld [vmem:[%s481 + $0x2c] sm:$0xf]
        %v527 = vld [vmem:[%s481 + $0x30] sm:$0xf]
        %v528 = vld [vmem:[%s481 + $0x34] sm:$0xf]
        %v529 = vld [vmem:[%s481 + $0x38] sm:$0xf]
        %v530 = vld [vmem:[%s481 + $0x3c] sm:$0xf]
        %v531 = vld [vmem:[%s481 + $0x40] sm:$0xf]
        %v532 = vld [vmem:[%s481 + $0x44] sm:$0xf]
        %v533 = vld [vmem:[%s481 + $0x48] sm:$0xf]
        %v534 = vld [vmem:[%s481 + $0x4c] sm:$0xf]
        %v535 = vld [vmem:[%s481 + $0x50] sm:$0xf]
        %v536 = vld [vmem:[%s481 + $0x54] sm:$0xf]
        %v537 = vld [vmem:[%s481 + $0x58] sm:$0xf]
        %v538 = vld [vmem:[%s481 + $0x5c] sm:$0xf]
        %v539 = vld [vmem:[%s481 + $0x60] sm:$0xf]
        %v540 = vld [vmem:[%s481 + $0x64] sm:$0xf]
        %v541 = vld [vmem:[%s481 + $0x68] sm:$0xf]
        %v542 = vld [vmem:[%s481 + $0x6c] sm:$0xf]
        %v543 = vld [vmem:[%s481 + $0x70] sm:$0xf]
        %v544 = vld [vmem:[%s481 + $0x74] sm:$0xf]
        %v545 = vld [vmem:[%s481 + $0x78] sm:$0xf]
        %v546 = vld [vmem:[%s481 + $0x7c] sm:$0xf]
        %v547 = vld [vmem:[%s481 + $0x80] sm:$0xf]
        %v548 = vld [vmem:[%s481 + $0x84] sm:$0xf]
        %v549 = vld [vmem:[%s481 + $0x88] sm:$0xf]
        %v550 = vld [vmem:[%s481 + $0x8c] sm:$0xf]
        %v551 = vld [vmem:[%s481 + $0x90] sm:$0xf]
        %v552 = vld [vmem:[%s481 + $0x94] sm:$0xf]
        %v553 = vld [vmem:[%s481 + $0x98] sm:$0xf]
        %v554 = vld [vmem:[%s481 + $0x9c] sm:$0xf]
        %v555 = vld [vmem:[%s481 + $0xa0] sm:$0xf]
        %v556 = vld [vmem:[%s481 + $0xa4] sm:$0xf]
        %v557 = vld [vmem:[%s481 + $0xa8] sm:$0xf]
        %v558 = vld [vmem:[%s481 + $0xac] sm:$0xf]
        %v559 = vld [vmem:[%s481 + $0xb0] sm:$0xf]
        %v560 = vld [vmem:[%s481 + $0xb4] sm:$0xf]
        %v561 = vld [vmem:[%s481 + $0xb8] sm:$0xf]
        %v562 = vld [vmem:[%s481 + $0xbc] sm:$0xf]
        %v563 = vld [vmem:[%s481 + $0xc0] sm:$0xf]
        %v564 = vld [vmem:[%s481 + $0xc4] sm:$0xf]
        %v565 = vld [vmem:[%s481 + $0xc8] sm:$0xf]
        %v566 = vld [vmem:[%s481 + $0xcc] sm:$0xf]
        %v567 = vld [vmem:[%s481 + $0xd0] sm:$0xf]
        %v568 = vld [vmem:[%s481 + $0xd4] sm:$0xf]
        %v569 = vld [vmem:[%s481 + $0xd8] sm:$0xf]
        %v570 = vld [vmem:[%s481 + $0xdc] sm:$0xf]
        %v571 = vld [vmem:[%s481 + $0xe0] sm:$0xf]
        %v572 = vld [vmem:[%s481 + $0xe4] sm:$0xf]
        %v573 = vld [vmem:[%s481 + $0xe8] sm:$0xf]
        %v574 = vld [vmem:[%s481 + $0xec] sm:$0xf]
        %v575 = vld [vmem:[%s481 + $0xf0] sm:$0xf]
        %v576 = vld [vmem:[%s481 + $0xf4] sm:$0xf]
        %v577 = vld [vmem:[%s481 + $0xf8] sm:$0xf]
        %v578 = vld [vmem:[%s481 + $0xfc] sm:$0xf]
        %v579 = vld [vmem:[%s1] sm:$0xf]
        %v580 = vld [vmem:[%s1 + $0x4] sm:$0xf]
        %v581 = vld [vmem:[%s1 + $0x8] sm:$0xf]
        %v582 = vld [vmem:[%s1 + $0xc] sm:$0xf]
        %v583 = vld [vmem:[%s1 + $0x10] sm:$0x3]
        %v584 = vld [vmem:[%s2] sm:$0x1]
        %v586 = vlaneseq
        %v587 = vshrl.u32 %v586, 7
        %v588 = vsub.s32 0, %v587
        %v589 = vrot.slane %v584, %v588
        %v655 = vunpack.c.l.b16 %v515
        %v656 = vunpack.c.l.b16 %v516
        %v657 = vunpack.c.l.b16 %v517
        %v658 = vunpack.c.l.b16 %v518
        %v659 = vunpack.c.l.b16 %v519
        %v660 = vunpack.c.l.b16 %v520
        %v661 = vunpack.c.l.b16 %v521
        %v662 = vunpack.c.l.b16 %v522
        %v663 = vunpack.c.l.b16 %v523
        %v664 = vunpack.c.l.b16 %v524
        %v665 = vunpack.c.l.b16 %v525
        %v666 = vunpack.c.l.b16 %v526
        %v667 = vunpack.c.l.b16 %v527
        %v668 = vunpack.c.l.b16 %v528
        %v669 = vunpack.c.l.b16 %v529
        %v670 = vunpack.c.l.b16 %v530
        %v671 = vunpack.c.l.b16 %v531
        %v672 = vunpack.c.l.b16 %v532
        %v673 = vunpack.c.l.b16 %v533
        %v674 = vunpack.c.l.b16 %v534
        %v675 = vunpack.c.l.b16 %v535
        %v676 = vunpack.c.l.b16 %v536
        %v677 = vunpack.c.l.b16 %v537
        %v678 = vunpack.c.l.b16 %v538
        %v679 = vunpack.c.l.b16 %v539
        %v680 = vunpack.c.l.b16 %v540
        %v681 = vunpack.c.l.b16 %v541
        %v682 = vunpack.c.l.b16 %v542
        %v683 = vunpack.c.l.b16 %v543
        %v684 = vunpack.c.l.b16 %v544
        %v685 = vunpack.c.l.b16 %v545
        %v686 = vunpack.c.l.b16 %v546
        %v687 = vunpack.c.l.b16 %v547
        %v688 = vunpack.c.l.b16 %v548
        %v689 = vunpack.c.l.b16 %v549
        %v690 = vunpack.c.l.b16 %v550
        %v691 = vunpack.c.l.b16 %v551
        %v692 = vunpack.c.l.b16 %v552
        %v693 = vunpack.c.l.b16 %v553
        %v694 = vunpack.c.l.b16 %v554
        %v695 = vunpack.c.l.b16 %v555
        %v696 = vunpack.c.l.b16 %v556
        %v697 = vunpack.c.l.b16 %v557
        %v698 = vunpack.c.l.b16 %v558
        %v699 = vunpack.c.l.b16 %v559
        %v700 = vunpack.c.l.b16 %v560
        %v701 = vunpack.c.l.b16 %v561
        %v702 = vunpack.c.l.b16 %v562
        %v703 = vunpack.c.l.b16 %v563
        %v704 = vunpack.c.l.b16 %v564
        %v705 = vunpack.c.l.b16 %v565
        %v706 = vunpack.c.l.b16 %v566
        %v707 = vunpack.c.l.b16 %v567
        %v708 = vunpack.c.l.b16 %v568
        %v709 = vunpack.c.l.b16 %v569
        %v710 = vunpack.c.l.b16 %v570
        %v711 = vunpack.c.l.b16 %v571
        %v712 = vunpack.c.l.b16 %v572
        %v713 = vunpack.c.l.b16 %v573
        %v714 = vunpack.c.l.b16 %v574
        %v715 = vunpack.c.l.b16 %v575
        %v716 = vunpack.c.l.b16 %v576
        %v717 = vunpack.c.l.b16 %v577
        %v718 = vunpack.c.l.b16 %v578
        %v719 = vpack.c.b16 %v656, %v655
        %v720 = vpack.c.b16 %v658, %v657
        %v721 = vpack.c.b16 %v660, %v659
        %v722 = vpack.c.b16 %v662, %v661
        %v723 = vpack.c.b16 %v664, %v663
        %v724 = vpack.c.b16 %v666, %v665
        %v725 = vpack.c.b16 %v668, %v667
        %v726 = vpack.c.b16 %v670, %v669
        %v727 = vpack.c.b16 %v672, %v671
        %v728 = vpack.c.b16 %v674, %v673
        %v729 = vpack.c.b16 %v676, %v675
        %v730 = vpack.c.b16 %v678, %v677
        %v731 = vpack.c.b16 %v680, %v679
        %v732 = vpack.c.b16 %v682, %v681
        %v733 = vpack.c.b16 %v684, %v683
        %v734 = vpack.c.b16 %v686, %v685
        %v735 = vpack.c.b16 %v688, %v687
        %v736 = vpack.c.b16 %v690, %v689
        %v737 = vpack.c.b16 %v692, %v691
        %v738 = vpack.c.b16 %v694, %v693
        %v739 = vpack.c.b16 %v696, %v695
        %v740 = vpack.c.b16 %v698, %v697
        %v741 = vpack.c.b16 %v700, %v699
        %v742 = vpack.c.b16 %v702, %v701
        %v743 = vpack.c.b16 %v704, %v703
        %v744 = vpack.c.b16 %v706, %v705
        %v745 = vpack.c.b16 %v708, %v707
        %v746 = vpack.c.b16 %v710, %v709
        %v747 = vpack.c.b16 %v712, %v711
        %v748 = vpack.c.b16 %v714, %v713
        %v749 = vpack.c.b16 %v716, %v715
        %v750 = vpack.c.b16 %v718, %v717
        %v756 = vunpack.c.l.b16 %v579
        %v757 = vunpack.c.l.b16 %v580
        %v758 = vunpack.c.l.b16 %v581
        %v759 = vunpack.c.l.b16 %v582
        %v760 = vunpack.c.l.b16 %v583
        %v761 = vpack.c.b16 %v757, %v756
        %v762 = vpack.c.b16 %v759, %v758
        %v763 = vpack.c.b16 %v760, %v760
        %vm766 = vcmask 293888
        %v768 = vsel %vm766, %v719, 0
        %v771 = vsel %vm766, %v720, 0
        %v774 = vsel %vm766, %v721, 0
        %v777 = vsel %vm766, %v722, 0
        %v780 = vsel %vm766, %v723, 0
        %v783 = vsel %vm766, %v724, 0
        %v786 = vsel %vm766, %v725, 0
        %v789 = vsel %vm766, %v726, 0
        %v792 = vsel %vm766, %v727, 0
        %v795 = vsel %vm766, %v728, 0
        %v798 = vsel %vm766, %v729, 0
        %v801 = vsel %vm766, %v730, 0
        %v804 = vsel %vm766, %v731, 0
        %v807 = vsel %vm766, %v732, 0
        %v810 = vsel %vm766, %v733, 0
        %v813 = vsel %vm766, %v734, 0
        %v816 = vsel %vm766, %v735, 0
        %v819 = vsel %vm766, %v736, 0
        %v822 = vsel %vm766, %v737, 0
        %v825 = vsel %vm766, %v738, 0
        %v828 = vsel %vm766, %v739, 0
        %v831 = vsel %vm766, %v740, 0
        %v834 = vsel %vm766, %v741, 0
        %v837 = vsel %vm766, %v742, 0
        %v840 = vsel %vm766, %v743, 0
        %v843 = vsel %vm766, %v744, 0
        %v846 = vsel %vm766, %v745, 0
        %v849 = vsel %vm766, %v746, 0
        %v852 = vsel %vm766, %v747, 0
        %v855 = vsel %vm766, %v748, 0
        %v858 = vsel %vm766, %v749, 0
        %v861 = vsel %vm766, %v750, 0
        %vm863 = vcmask 1041408
        %v865 = vsel %vm863, %v763, 0
        %867 = vmatprep.subr.bf16.mxu0 0
        %868 = vmatpush1.bf16.msra.mxu0 %v761
        %869 = vmatprep.subr.bf16.mxu0 0
        %870 = vmatpush1.bf16.msra.mxu0 %v762
        %871 = vmatprep.subr.bf16.mxu0 0
        %872 = vmatpush1.bf16.msra.mxu0 %v865
        %873 = vmatprep.subr.bf16.mxu0 0
        %874 = vmatpush1.bf16.msra.mxu0 0
        %875 = vmatprep.subr.bf16.mxu0 0
        %876 = vmatpush1.bf16.msra.mxu0 0
        %877 = vmatprep.subr.bf16.mxu0 0
        %878 = vmatpush1.bf16.msra.mxu0 0
        %879 = vmatprep.subr.bf16.mxu0 0
        %880 = vmatpush1.bf16.msra.mxu0 0
        %881 = vmatprep.subr.bf16.mxu0 0
        %882 = vmatpush1.bf16.msra.mxu0 0
        %883 = vmatprep.subr.bf16.mxu0 0
        %884 = vmatpush1.bf16.msra.mxu0 0
        %885 = vmatprep.subr.bf16.mxu0 0
        %886 = vmatpush1.bf16.msra.mxu0 0
        %887 = vmatprep.subr.bf16.mxu0 0
        %888 = vmatpush1.bf16.msra.mxu0 0
        %889 = vmatprep.subr.bf16.mxu0 0
        %890 = vmatpush1.bf16.msra.mxu0 0
        %891 = vmatprep.subr.bf16.mxu0 0
        %892 = vmatpush1.bf16.msra.mxu0 0
        %893 = vmatprep.subr.bf16.mxu0 0
        %894 = vmatpush1.bf16.msra.mxu0 0
        %895 = vmatprep.subr.bf16.mxu0 0
        %896 = vmatpush1.bf16.msra.mxu0 0
        %897 = vmatprep.subr.bf16.mxu0 0
        %898 = vmatpush1.bf16.msra.mxu0 0
        %899 = vmatprep.mubr.bf16.mxu0 0
        %900 = vmatmul.mubr.bf16.gmra.mrb[0].mxu0 %v768
        %v901 = vpop.f32.mrb[0].mxu0
        %v902 = vadd.f32 %v589, %v901
        %v903 = vpop.f32.mrb[0].mxu0
        %v904 = vpop.f32.mrb[0].mxu0
        %v905 = vadd.f32 %v589, %v904
        %v906 = vpop.f32.mrb[0].mxu0
        %907 = vmatprep.mubr.bf16.mxu0 0
        %908 = vmatmul.mubr.bf16.gmra.mrb[0].mxu0 %v771
        %v909 = vpop.f32.mrb[0].mxu0
        %v910 = vadd.f32 %v589, %v909
        %v911 = vpop.f32.mrb[0].mxu0
        %v912 = vpop.f32.mrb[0].mxu0
        %v913 = vadd.f32 %v589, %v912
        %v914 = vpop.f32.mrb[0].mxu0
        %915 = vmatprep.mubr.bf16.mxu0 0
        %916 = vmatmul.mubr.bf16.gmra.mrb[0].mxu0 %v774
        %v917 = vpop.f32.mrb[0].mxu0
        %v918 = vadd.f32 %v589, %v917
        %v919 = vpop.f32.mrb[0].mxu0
        %v920 = vpop.f32.mrb[0].mxu0
        %v921 = vadd.f32 %v589, %v920
        %v922 = vpop.f32.mrb[0].mxu0
        %923 = vmatprep.mubr.bf16.mxu0 0
        %924 = vmatmul.mubr.bf16.gmra.mrb[0].mxu0 %v777
        %v925 = vpop.f32.mrb[0].mxu0
        %v926 = vadd.f32 %v589, %v925
        %v927 = vpop.f32.mrb[0].mxu0
        %v928 = vpop.f32.mrb[0].mxu0
        %v929 = vadd.f32 %v589, %v928
        %v930 = vpop.f32.mrb[0].mxu0
        %931 = vmatprep.mubr.bf16.mxu0 0
        %932 = vmatmul.mubr.bf16.gmra.mrb[0].mxu0 %v780
        %v933 = vpop.f32.mrb[0].mxu0
        %v934 = vadd.f32 %v589, %v933
        %v935 = vpop.f32.mrb[0].mxu0
        %v936 = vpop.f32.mrb[0].mxu0
        %v937 = vadd.f32 %v589, %v936
        %v938 = vpop.f32.mrb[0].mxu0
        %939 = vmatprep.mubr.bf16.mxu0 0
        %940 = vmatmul.mubr.bf16.gmra.mrb[0].mxu0 %v783
        %v941 = vpop.f32.mrb[0].mxu0
        %v942 = vadd.f32 %v589, %v941
        %v943 = vpop.f32.mrb[0].mxu0
        %v944 = vpop.f32.mrb[0].mxu0
        %v945 = vadd.f32 %v589, %v944
        %v946 = vpop.f32.mrb[0].mxu0
        %947 = vmatprep.mubr.bf16.mxu0 0
        %948 = vmatmul.mubr.bf16.gmra.mrb[0].mxu0 %v786
        %v949 = vpop.f32.mrb[0].mxu0
        %v950 = vadd.f32 %v589, %v949
        %v951 = vpop.f32.mrb[0].mxu0
        %v952 = vpop.f32.mrb[0].mxu0
        %v953 = vadd.f32 %v589, %v952
        %v954 = vpop.f32.mrb[0].mxu0
        %955 = vmatprep.mubr.bf16.mxu0 0
        %956 = vmatmul.mubr.bf16.gmra.mrb[0].mxu0 %v789
        %v957 = vpop.f32.mrb[0].mxu0
        %v958 = vadd.f32 %v589, %v957
        %v959 = vpop.f32.mrb[0].mxu0
        %v960 = vpop.f32.mrb[0].mxu0
        %v961 = vadd.f32 %v589, %v960
        %v962 = vpop.f32.mrb[0].mxu0
        %963 = vmatprep.mubr.bf16.mxu0 0
        %964 = vmatmul.mubr.bf16.gmra.mrb[0].mxu0 %v792
        %v965 = vpop.f32.mrb[0].mxu0
        %v966 = vadd.f32 %v589, %v965
        %v967 = vpop.f32.mrb[0].mxu0
        %v968 = vpop.f32.mrb[0].mxu0
        %v969 = vadd.f32 %v589, %v968
        %v970 = vpop.f32.mrb[0].mxu0
        %971 = vmatprep.mubr.bf16.mxu0 0
        %972 = vmatmul.mubr.bf16.gmra.mrb[0].mxu0 %v795
        %v973 = vpop.f32.mrb[0].mxu0
        %v974 = vadd.f32 %v589, %v973
        %v975 = vpop.f32.mrb[0].mxu0
        %v976 = vpop.f32.mrb[0].mxu0
        %v977 = vadd.f32 %v589, %v976
        %v978 = vpop.f32.mrb[0].mxu0
        %979 = vmatprep.mubr.bf16.mxu0 0
        %980 = vmatmul.mubr.bf16.gmra.mrb[0].mxu0 %v798
        %v981 = vpop.f32.mrb[0].mxu0
        %v982 = vadd.f32 %v589, %v981
        %v983 = vpop.f32.mrb[0].mxu0
        %v984 = vpop.f32.mrb[0].mxu0
        %v985 = vadd.f32 %v589, %v984
        %v986 = vpop.f32.mrb[0].mxu0
        %987 = vmatprep.mubr.bf16.mxu0 0
        %988 = vmatmul.mubr.bf16.gmra.mrb[0].mxu0 %v801
        %v989 = vpop.f32.mrb[0].mxu0
        %v990 = vadd.f32 %v589, %v989
        %v991 = vpop.f32.mrb[0].mxu0
        %v992 = vpop.f32.mrb[0].mxu0
        %v993 = vadd.f32 %v589, %v992
        %v994 = vpop.f32.mrb[0].mxu0
        %995 = vmatprep.mubr.bf16.mxu0 0
        %996 = vmatmul.mubr.bf16.gmra.mrb[0].mxu0 %v804
        %v997 = vpop.f32.mrb[0].mxu0
        %v998 = vadd.f32 %v589, %v997
        %v999 = vpop.f32.mrb[0].mxu0
        %v1000 = vpop.f32.mrb[0].mxu0
        %v1001 = vadd.f32 %v589, %v1000
        %v1002 = vpop.f32.mrb[0].mxu0
        %1003 = vmatprep.mubr.bf16.mxu0 0
        %1004 = vmatmul.mubr.bf16.gmra.mrb[0].mxu0 %v807
        %v1005 = vpop.f32.mrb[0].mxu0
        %v1006 = vadd.f32 %v589, %v1005
        %v1007 = vpop.f32.mrb[0].mxu0
        %v1008 = vpop.f32.mrb[0].mxu0
        %v1009 = vadd.f32 %v589, %v1008
        %v1010 = vpop.f32.mrb[0].mxu0
        %1011 = vmatprep.mubr.bf16.mxu0 0
        %1012 = vmatmul.mubr.bf16.gmra.mrb[0].mxu0 %v810
        %v1013 = vpop.f32.mrb[0].mxu0
        %v1014 = vadd.f32 %v589, %v1013
        %v1015 = vpop.f32.mrb[0].mxu0
        %v1016 = vpop.f32.mrb[0].mxu0
        %v1017 = vadd.f32 %v589, %v1016
        %v1018 = vpop.f32.mrb[0].mxu0
        %1019 = vmatprep.mubr.bf16.mxu0 0
        %1020 = vmatmul.mubr.bf16.gmra.mrb[0].mxu0 %v813
        %v1021 = vpop.f32.mrb[0].mxu0
        %v1022 = vadd.f32 %v589, %v1021
        %v1023 = vpop.f32.mrb[0].mxu0
        %v1024 = vpop.f32.mrb[0].mxu0
        %v1025 = vadd.f32 %v589, %v1024
        %v1026 = vpop.f32.mrb[0].mxu0
        %1027 = vmatprep.mubr.bf16.mxu0 0
        %1028 = vmatmul.mubr.bf16.gmra.mrb[0].mxu0 %v816
        %v1029 = vpop.f32.mrb[0].mxu0
        %v1030 = vadd.f32 %v589, %v1029
        %v1031 = vpop.f32.mrb[0].mxu0
        %v1032 = vpop.f32.mrb[0].mxu0
        %v1033 = vadd.f32 %v589, %v1032
        %v1034 = vpop.f32.mrb[0].mxu0
        %1035 = vmatprep.mubr.bf16.mxu0 0
        %1036 = vmatmul.mubr.bf16.gmra.mrb[0].mxu0 %v819
        %v1037 = vpop.f32.mrb[0].mxu0
        %v1038 = vadd.f32 %v589, %v1037
        %v1039 = vpop.f32.mrb[0].mxu0
        %v1040 = vpop.f32.mrb[0].mxu0
        %v1041 = vadd.f32 %v589, %v1040
        %v1042 = vpop.f32.mrb[0].mxu0
        %1043 = vmatprep.mubr.bf16.mxu0 0
        %1044 = vmatmul.mubr.bf16.gmra.mrb[0].mxu0 %v822
        %v1045 = vpop.f32.mrb[0].mxu0
        %v1046 = vadd.f32 %v589, %v1045
        %v1047 = vpop.f32.mrb[0].mxu0
        %v1048 = vpop.f32.mrb[0].mxu0
        %v1049 = vadd.f32 %v589, %v1048
        %v1050 = vpop.f32.mrb[0].mxu0
        %1051 = vmatprep.mubr.bf16.mxu0 0
        %1052 = vmatmul.mubr.bf16.gmra.mrb[0].mxu0 %v825
        %v1053 = vpop.f32.mrb[0].mxu0
        %v1054 = vadd.f32 %v589, %v1053
        %v1055 = vpop.f32.mrb[0].mxu0
        %v1056 = vpop.f32.mrb[0].mxu0
        %v1057 = vadd.f32 %v589, %v1056
        %v1058 = vpop.f32.mrb[0].mxu0
        %1059 = vmatprep.mubr.bf16.mxu0 0
        %1060 = vmatmul.mubr.bf16.gmra.mrb[0].mxu0 %v828
        %v1061 = vpop.f32.mrb[0].mxu0
        %v1062 = vadd.f32 %v589, %v1061
        %v1063 = vpop.f32.mrb[0].mxu0
        %v1064 = vpop.f32.mrb[0].mxu0
        %v1065 = vadd.f32 %v589, %v1064
        %v1066 = vpop.f32.mrb[0].mxu0
        %1067 = vmatprep.mubr.bf16.mxu0 0
        %1068 = vmatmul.mubr.bf16.gmra.mrb[0].mxu0 %v831
        %v1069 = vpop.f32.mrb[0].mxu0
        %v1070 = vadd.f32 %v589, %v1069
        %v1071 = vpop.f32.mrb[0].mxu0
        %v1072 = vpop.f32.mrb[0].mxu0
        %v1073 = vadd.f32 %v589, %v1072
        %v1074 = vpop.f32.mrb[0].mxu0
        %1075 = vmatprep.mubr.bf16.mxu0 0
        %1076 = vmatmul.mubr.bf16.gmra.mrb[0].mxu0 %v834
        %v1077 = vpop.f32.mrb[0].mxu0
        %v1078 = vadd.f32 %v589, %v1077
        %v1079 = vpop.f32.mrb[0].mxu0
        %v1080 = vpop.f32.mrb[0].mxu0
        %v1081 = vadd.f32 %v589, %v1080
        %v1082 = vpop.f32.mrb[0].mxu0
        %1083 = vmatprep.mubr.bf16.mxu0 0
        %1084 = vmatmul.mubr.bf16.gmra.mrb[0].mxu0 %v837
        %v1085 = vpop.f32.mrb[0].mxu0
        %v1086 = vadd.f32 %v589, %v1085
        %v1087 = vpop.f32.mrb[0].mxu0
        %v1088 = vpop.f32.mrb[0].mxu0
        %v1089 = vadd.f32 %v589, %v1088
        %v1090 = vpop.f32.mrb[0].mxu0
        %1091 = vmatprep.mubr.bf16.mxu0 0
        %1092 = vmatmul.mubr.bf16.gmra.mrb[0].mxu0 %v840
        %v1093 = vpop.f32.mrb[0].mxu0
        %v1094 = vadd.f32 %v589, %v1093
        %v1095 = vpop.f32.mrb[0].mxu0
        %v1096 = vpop.f32.mrb[0].mxu0
        %v1097 = vadd.f32 %v589, %v1096
        %v1098 = vpop.f32.mrb[0].mxu0
        %1099 = vmatprep.mubr.bf16.mxu0 0
        %1100 = vmatmul.mubr.bf16.gmra.mrb[0].mxu0 %v843
        %v1101 = vpop.f32.mrb[0].mxu0
        %v1102 = vadd.f32 %v589, %v1101
        %v1103 = vpop.f32.mrb[0].mxu0
        %v1104 = vpop.f32.mrb[0].mxu0
        %v1105 = vadd.f32 %v589, %v1104
        %v1106 = vpop.f32.mrb[0].mxu0
        %1107 = vmatprep.mubr.bf16.mxu0 0
        %1108 = vmatmul.mubr.bf16.gmra.mrb[0].mxu0 %v846
        %v1109 = vpop.f32.mrb[0].mxu0
        %v1110 = vadd.f32 %v589, %v1109
        %v1111 = vpop.f32.mrb[0].mxu0
        %v1112 = vpop.f32.mrb[0].mxu0
        %v1113 = vadd.f32 %v589, %v1112
        %v1114 = vpop.f32.mrb[0].mxu0
        %1115 = vmatprep.mubr.bf16.mxu0 0
        %1116 = vmatmul.mubr.bf16.gmra.mrb[0].mxu0 %v849
        %v1117 = vpop.f32.mrb[0].mxu0
        %v1118 = vadd.f32 %v589, %v1117
        %v1119 = vpop.f32.mrb[0].mxu0
        %v1120 = vpop.f32.mrb[0].mxu0
        %v1121 = vadd.f32 %v589, %v1120
        %v1122 = vpop.f32.mrb[0].mxu0
        %1123 = vmatprep.mubr.bf16.mxu0 0
        %1124 = vmatmul.mubr.bf16.gmra.mrb[0].mxu0 %v852
        %v1125 = vpop.f32.mrb[0].mxu0
        %v1126 = vadd.f32 %v589, %v1125
        %v1127 = vpop.f32.mrb[0].mxu0
        %v1128 = vpop.f32.mrb[0].mxu0
        %v1129 = vadd.f32 %v589, %v1128
        %v1130 = vpop.f32.mrb[0].mxu0
        %1131 = vmatprep.mubr.bf16.mxu0 0
        %1132 = vmatmul.mubr.bf16.gmra.mrb[0].mxu0 %v855
        %v1133 = vpop.f32.mrb[0].mxu0
        %v1134 = vadd.f32 %v589, %v1133
        %v1135 = vpop.f32.mrb[0].mxu0
        %v1136 = vpop.f32.mrb[0].mxu0
        %v1137 = vadd.f32 %v589, %v1136
        %v1138 = vpop.f32.mrb[0].mxu0
        %1139 = vmatprep.mubr.bf16.mxu0 0
        %1140 = vmatmul.mubr.bf16.gmra.mrb[0].mxu0 %v858
        %v1141 = vpop.f32.mrb[0].mxu0
        %v1142 = vadd.f32 %v589, %v1141
        %v1143 = vpop.f32.mrb[0].mxu0
        %v1144 = vpop.f32.mrb[0].mxu0
        %v1145 = vadd.f32 %v589, %v1144
        %v1146 = vpop.f32.mrb[0].mxu0
        %1147 = vmatprep.mubr.bf16.mxu0 0
        %1148 = vmatmul.mubr.bf16.gmra.mrb[0].mxu0 %v861
        %v1149 = vpop.f32.mrb[0].mxu0
        %v1150 = vadd.f32 %v589, %v1149
        %v1151 = vpop.f32.mrb[0].mxu0
        %v1152 = vpop.f32.mrb[0].mxu0
        %v1153 = vadd.f32 %v589, %v1152
        %v1154 = vpop.f32.mrb[0].mxu0
        %1155 = vdwg.mxu0
        %v1156 = vmax.f32 %v902, 0.0
        %v1157 = vmax.f32 %v905, 0.0
        %v1158 = vmax.f32 %v910, 0.0
        %v1159 = vmax.f32 %v913, 0.0
        %v1160 = vmax.f32 %v918, 0.0
        %v1161 = vmax.f32 %v921, 0.0
        %v1162 = vmax.f32 %v926, 0.0
        %v1163 = vmax.f32 %v929, 0.0
        %v1164 = vmax.f32 %v934, 0.0
        %v1165 = vmax.f32 %v937, 0.0
        %v1166 = vmax.f32 %v942, 0.0
        %v1167 = vmax.f32 %v945, 0.0
        %v1168 = vmax.f32 %v950, 0.0
        %v1169 = vmax.f32 %v953, 0.0
        %v1170 = vmax.f32 %v958, 0.0
        %v1171 = vmax.f32 %v961, 0.0
        %v1172 = vmax.f32 %v966, 0.0
        %v1173 = vmax.f32 %v969, 0.0
        %v1174 = vmax.f32 %v974, 0.0
        %v1175 = vmax.f32 %v977, 0.0
        %v1176 = vmax.f32 %v982, 0.0
        %v1177 = vmax.f32 %v985, 0.0
        %v1178 = vmax.f32 %v990, 0.0
        %v1179 = vmax.f32 %v993, 0.0
        %v1180 = vmax.f32 %v998, 0.0
        %v1181 = vmax.f32 %v1001, 0.0
        %v1182 = vmax.f32 %v1006, 0.0
        %v1183 = vmax.f32 %v1009, 0.0
        %v1184 = vmax.f32 %v1014, 0.0
        %v1185 = vmax.f32 %v1017, 0.0
        %v1186 = vmax.f32 %v1022, 0.0
        %v1187 = vmax.f32 %v1025, 0.0
        %v1188 = vmax.f32 %v1030, 0.0
        %v1189 = vmax.f32 %v1033, 0.0
        %v1190 = vmax.f32 %v1038, 0.0
        %v1191 = vmax.f32 %v1041, 0.0
        %v1192 = vmax.f32 %v1046, 0.0
        %v1193 = vmax.f32 %v1049, 0.0
        %v1194 = vmax.f32 %v1054, 0.0
        %v1195 = vmax.f32 %v1057, 0.0
        %v1196 = vmax.f32 %v1062, 0.0
        %v1197 = vmax.f32 %v1065, 0.0
        %v1198 = vmax.f32 %v1070, 0.0
        %v1199 = vmax.f32 %v1073, 0.0
        %v1200 = vmax.f32 %v1078, 0.0
        %v1201 = vmax.f32 %v1081, 0.0
        %v1202 = vmax.f32 %v1086, 0.0
        %v1203 = vmax.f32 %v1089, 0.0
        %v1204 = vmax.f32 %v1094, 0.0
        %v1205 = vmax.f32 %v1097, 0.0
        %v1206 = vmax.f32 %v1102, 0.0
        %v1207 = vmax.f32 %v1105, 0.0
        %v1208 = vmax.f32 %v1110, 0.0
        %v1209 = vmax.f32 %v1113, 0.0
        %v1210 = vmax.f32 %v1118, 0.0
        %v1211 = vmax.f32 %v1121, 0.0
        %v1212 = vmax.f32 %v1126, 0.0
        %v1213 = vmax.f32 %v1129, 0.0
        %v1214 = vmax.f32 %v1134, 0.0
        %v1215 = vmax.f32 %v1137, 0.0
        %v1216 = vmax.f32 %v1142, 0.0
        %v1217 = vmax.f32 %v1145, 0.0
        %v1218 = vmax.f32 %v1150, 0.0
        %v1219 = vmax.f32 %v1153, 0.0
        %v1220 = vld [vmem:[%s508] sm:$0xf]
        %v1221 = vld [vmem:[%s3] sm:$0xff]
        %v1222 = vld [vmem:[%s3 + $0x8] sm:$0xff]
        %v1225 = vcombine.high %v1221, %v1221
        %v1226 = vcombine.high %v1222, %v1222
        %1229 = vmatprep.subr.mxu0 0.0
        %1230 = vmatpush1.msra.mxu0 %v1156
        %1231 = vmatprep.subr.mxu0 0.0
        %1232 = vmatpush1.msra.mxu0 %v1157
        %1233 = vmatprep.subr.mxu0 0.0
        %1234 = vmatpush1.msra.mxu0 %v1158
        %1235 = vmatprep.subr.mxu0 0.0
        %1236 = vmatpush1.msra.mxu0 %v1159
        %1237 = vmatprep.subr.mxu0 0.0
        %1238 = vmatpush1.msra.mxu0 %v1160
        %1239 = vmatprep.subr.mxu0 0.0
        %1240 = vmatpush1.msra.mxu0 %v1161
        %1241 = vmatprep.subr.mxu0 0.0
        %1242 = vmatpush1.msra.mxu0 %v1162
        %1243 = vmatprep.subr.mxu0 0.0
        %1244 = vmatpush1.msra.mxu0 %v1163
        %1245 = vmatprep.subr.mxu0 0.0
        %1246 = vmatpush1.msra.mxu0 %v1164
        %1247 = vmatprep.subr.mxu0 0.0
        %1248 = vmatpush1.msra.mxu0 %v1165
        %1249 = vmatprep.subr.mxu0 0.0
        %1250 = vmatpush1.msra.mxu0 %v1166
        %1251 = vmatprep.subr.mxu0 0.0
        %1252 = vmatpush1.msra.mxu0 %v1167
        %1253 = vmatprep.subr.mxu0 0.0
        %1254 = vmatpush1.msra.mxu0 %v1168
        %1255 = vmatprep.subr.mxu0 0.0
        %1256 = vmatpush1.msra.mxu0 %v1169
        %1257 = vmatprep.subr.mxu0 0.0
        %1258 = vmatpush1.msra.mxu0 %v1170
        %1259 = vmatprep.subr.mxu0 0.0
        %1260 = vmatpush1.msra.mxu0 %v1171
        %1261 = vmatprep.subr.mxu0 0.0
        %1262 = vmatpush1.msra.mxu0 %v1172
        %1263 = vmatprep.subr.mxu0 0.0
        %1264 = vmatpush1.msra.mxu0 %v1173
        %1265 = vmatprep.subr.mxu0 0.0
        %1266 = vmatpush1.msra.mxu0 %v1174
        %1267 = vmatprep.subr.mxu0 0.0
        %1268 = vmatpush1.msra.mxu0 %v1175
        %1269 = vmatprep.subr.mxu0 0.0
        %1270 = vmatpush1.msra.mxu0 %v1176
        %1271 = vmatprep.subr.mxu0 0.0
        %1272 = vmatpush1.msra.mxu0 %v1177
        %1273 = vmatprep.subr.mxu0 0.0
        %1274 = vmatpush1.msra.mxu0 %v1178
        %1275 = vmatprep.subr.mxu0 0.0
        %1276 = vmatpush1.msra.mxu0 %v1179
        %1277 = vmatprep.subr.mxu0 0.0
        %1278 = vmatpush1.msra.mxu0 %v1180
        %1279 = vmatprep.subr.mxu0 0.0
        %1280 = vmatpush1.msra.mxu0 %v1181
        %1281 = vmatprep.subr.mxu0 0.0
        %1282 = vmatpush1.msra.mxu0 %v1182
        %1283 = vmatprep.subr.mxu0 0.0
        %1284 = vmatpush1.msra.mxu0 %v1183
        %1285 = vmatprep.subr.mxu0 0.0
        %1286 = vmatpush1.msra.mxu0 %v1184
        %1287 = vmatprep.subr.mxu0 0.0
        %1288 = vmatpush1.msra.mxu0 %v1185
        %1289 = vmatprep.subr.mxu0 0.0
        %1290 = vmatpush1.msra.mxu0 %v1186
        %1291 = vmatprep.subr.mxu0 0.0
        %1292 = vmatpush1.msra.mxu0 %v1187
        %1293 = vmatprep.mubr.f32.mxu0 %v1225
        %1294 = vmatmul.mubr.f32.gmra.mrb[0].mxu0 %v1221
        %v1295 = vpop.f32.mrb[0].mxu0
        %v1296 = vadd.f32 0.0, %v1295
        %v1297 = vpop.f32.mrb[0].mxu0
        %1298 = vdwg.mxu0
        %1299 = vmatprep.subr.mxu0 0.0
        %1300 = vmatpush1.msra.mxu0 %v1188
        %1301 = vmatprep.subr.mxu0 0.0
        %1302 = vmatpush1.msra.mxu0 %v1189
        %1303 = vmatprep.subr.mxu0 0.0
        %1304 = vmatpush1.msra.mxu0 %v1190
        %1305 = vmatprep.subr.mxu0 0.0
        %1306 = vmatpush1.msra.mxu0 %v1191
        %1307 = vmatprep.subr.mxu0 0.0
        %1308 = vmatpush1.msra.mxu0 %v1192
        %1309 = vmatprep.subr.mxu0 0.0
        %1310 = vmatpush1.msra.mxu0 %v1193
        %1311 = vmatprep.subr.mxu0 0.0
        %1312 = vmatpush1.msra.mxu0 %v1194
        %1313 = vmatprep.subr.mxu0 0.0
        %1314 = vmatpush1.msra.mxu0 %v1195
        %1315 = vmatprep.subr.mxu0 0.0
        %1316 = vmatpush1.msra.mxu0 %v1196
        %1317 = vmatprep.subr.mxu0 0.0
        %1318 = vmatpush1.msra.mxu0 %v1197
        %1319 = vmatprep.subr.mxu0 0.0
        %1320 = vmatpush1.msra.mxu0 %v1198
        %1321 = vmatprep.subr.mxu0 0.0
        %1322 = vmatpush1.msra.mxu0 %v1199
        %1323 = vmatprep.subr.mxu0 0.0
        %1324 = vmatpush1.msra.mxu0 %v1200
        %1325 = vmatprep.subr.mxu0 0.0
        %1326 = vmatpush1.msra.mxu0 %v1201
        %1327 = vmatprep.subr.mxu0 0.0
        %1328 = vmatpush1.msra.mxu0 %v1202
        %1329 = vmatprep.subr.mxu0 0.0
        %1330 = vmatpush1.msra.mxu0 %v1203
        %1331 = vmatprep.subr.mxu0 0.0
        %1332 = vmatpush1.msra.mxu0 %v1204
        %1333 = vmatprep.subr.mxu0 0.0
        %1334 = vmatpush1.msra.mxu0 %v1205
        %1335 = vmatprep.subr.mxu0 0.0
        %1336 = vmatpush1.msra.mxu0 %v1206
        %1337 = vmatprep.subr.mxu0 0.0
        %1338 = vmatpush1.msra.mxu0 %v1207
        %1339 = vmatprep.subr.mxu0 0.0
        %1340 = vmatpush1.msra.mxu0 %v1208
        %1341 = vmatprep.subr.mxu0 0.0
        %1342 = vmatpush1.msra.mxu0 %v1209
        %1343 = vmatprep.subr.mxu0 0.0
        %1344 = vmatpush1.msra.mxu0 %v1210
        %1345 = vmatprep.subr.mxu0 0.0
        %1346 = vmatpush1.msra.mxu0 %v1211
        %1347 = vmatprep.subr.mxu0 0.0
        %1348 = vmatpush1.msra.mxu0 %v1212
        %1349 = vmatprep.subr.mxu0 0.0
        %1350 = vmatpush1.msra.mxu0 %v1213
        %1351 = vmatprep.subr.mxu0 0.0
        %1352 = vmatpush1.msra.mxu0 %v1214
        %1353 = vmatprep.subr.mxu0 0.0
        %1354 = vmatpush1.msra.mxu0 %v1215
        %1355 = vmatprep.subr.mxu0 0.0
        %1356 = vmatpush1.msra.mxu0 %v1216
        %1357 = vmatprep.subr.mxu0 0.0
        %1358 = vmatpush1.msra.mxu0 %v1217
        %1359 = vmatprep.subr.mxu0 0.0
        %1360 = vmatpush1.msra.mxu0 %v1218
        %1361 = vmatprep.subr.mxu0 0.0
        %1362 = vmatpush1.msra.mxu0 %v1219
        %1363 = vmatprep.mubr.f32.mxu0 %v1226
        %1364 = vmatmul.mubr.f32.gmra.mrb[0].mxu0 %v1222
        %v1365 = vpop.f32.mrb[0].mxu0
        %v1366 = vadd.f32 %v1296, %v1365
        %v1367 = vpop.f32.mrb[0].mxu0
        %1368 = vdwg.mxu0
        %v1369 = vadd.f32 %v1220, %v1366
        %1370 = vst [vmem:[%s508] sm:$0xf] %v1369
        %p1371 = scmp.lt.s32.totalorder %s19, 0
        %s1372 = scalar_select %p1371, %s19, 0
        %s1373 = smul.addr %s1372, 4
        %s1374 = scalar_lea.vmem %s4, %s1373
        // Predicated region
        $region82: #{supcont_forward.2} parent=72 // pred_check
          %p1375 = pneg %p136
        $region83: #{supcont_forward.2} parent=72 // pred_check_branch
          %1377 = sbr.rel (%p1375) target = $region85
        $region84: #{supcont_forward.2} parent=72 // pred_region
          _
        $region85: #{supcont_forward.2} parent=72 // pred_fallthru
          _
        // Predicated region
        $region86: #{supcont_forward.2} parent=72 // pred_check
          %p1378 = pneg %p136
        $region87: #{supcont_forward.2} parent=72 // pred_check_branch
          %1380 = sbr.rel (%p1378) target = $region89
        $region88: #{supcont_forward.2} parent=72 // pred_region
          %p1381 = scmp.lt.s32.totalorder %s19, 0
          %s1382 = scalar_select %p1381, %s19, 0
          %s1383 = smul.addr %s1382, 4
          %s1384 = scalar_lea.vmem %s4, %s1383
        $region89: #{supcont_forward.2} parent=72 // pred_fallthru
          _
      $region73: #{supcont_forward.2} parent=5 // pred_fallthru
        _
      %p1385 = scmp.le.s32.totalorder 2, %s10
      // Predicated region
      $region90: #{supcont_forward.2} parent=5 // pred_check
        %p1386 = pneg %p1385
      $region91: #{supcont_forward.2} parent=5 // pred_check_branch
        %1388 = sbr.rel (%p1386) target = $region93
      $region92: #{supcont_forward.2} parent=5 // pred_region
        %s1389 = ssub.s32 %s10, 2
      $region93: #{supcont_forward.2} parent=5 // pred_fallthru
        _
    $region6: #{supcont_forward.2} parent=1 // loop_footer
      %s14 = sadd.s32 1, %s10
    $region7: #{supcont_forward.2} parent=1 // loop_footer_branch
      %9 = sbr.rel target = $region3
    $region8: #{supcont_forward.2} parent=1 // loop_exit
      _

</llo_original>
